<compile_context>
chip_gen: v5e
topology: v5e:2x2
jax: 0.10.0
libtpu: 0.0.40
codegen_flags: <defaults>
</compile_context>

<pallas_src>
import math
from functools import partial

import numpy as np
import jax
import jax.numpy as jnp
from jax.experimental import pallas as pl
from jax.experimental.pallas import tpu as pltpu


# pattern -> (period, {(i_mod, j_mod): base_shift})   (missing cells shift by 0)
_PATTERNS = {
    "A": (2, {(0, 1): 1, (1, 0): -1}),
    "B": (2, {(0, 1): 1, (1, 0): -1, (1, 1): 2}),
    "C": (3, {(0, 0): -4, (0, 1): 1, (1, 0): -1, (0, 2): 2,
              (2, 0): -2, (1, 2): 3, (2, 1): -3, (2, 2): 4}),
    "D": (4, {(0, 1): 1, (0, 2): 2, (0, 3): 3,
              (1, 0): -1, (1, 1): -7, (1, 2): 4, (1, 3): 5,
              (2, 0): 2, (2, 1): -4, (2, 2): 7, (2, 3): 6,
              (3, 0): -3, (3, 1): -5, (3, 2): -6, (3, 3): 8}),
}

_MAX_UNROLL_T = 64  # fully unroll the frame loop up to this clip length


def _patch_shift_kernel(shift_ref, x_ref, o_ref, *, shifts, frame_len):
    """One grid point = (row-chunk lc, batch b).  Produces ALL output frames.

    shift_ref: (tS, lane) int32 — per-ELEMENT temporal shift (0 = no shift)
    x_ref:     (frame_len, tS, lane) — all frames of this (b, lc) chunk
    o_ref:     (frame_len, tS, lane) — all output frames of this chunk
    """
    smap = shift_ref[...]  # same shape as each frame — no broadcasts in the loop

    if frame_len <= _MAX_UNROLL_T:
        # Static unroll: every source-frame index is a compile-time constant.
        for t in range(frame_len):
            res = x_ref[t]                         # unshifted default (shift == 0)
            for s in shifts:                       # shifts are static ints, s != 0
                src = (t - s) % frame_len          # torch.roll: out[t] = x[(t-s)%T]
                res = jnp.where(smap == s, x_ref[src], res)
            o_ref[t] = res
    else:
        # Very long clips: keep code size bounded with a fori_loop over t.
        def body(t, carry):
            res = x_ref[t]
            for s in shifts:
                src = jnp.mod(t - s, frame_len)
                res = jnp.where(smap == s, x_ref[src], res)
            o_ref[t] = res
            return carry
        jax.lax.fori_loop(0, frame_len, body, 0)


def _choose_row_tile(S, frame_len, lane, itemsize, budget_bytes=8 << 20):
    """Largest tS (multiple of 8, divisor of S) whose blocks fit the budget."""
    if S % 8 != 0:
        # (8,128) rule: second-to-last block dim must be a multiple of 8 or the
        # full extent — if S itself is not a multiple of 8 we must take it whole.
        return S
    pad_lane = -(-lane // 128) * 128
    per_row = (2 * 2 * frame_len * pad_lane * itemsize   # x + out, double-buffered
               + 2 * pad_lane * 4)                       # shift map, double-buffered
    best = None
    for cand in range(8, S + 1, 8):
        if S % cand == 0 and cand * per_row <= budget_bytes:
            best = cand
    if best is None:
        # TODO(synk): also tile the frame axis for extremely long clips; today we
        # keep all frames of a chunk resident, so fall back to the minimal chunk.
        best = 8
    return best


def patch_shift(x, batch_size, frame_len, *, n_div=8, inv=False, ratio=1, pattern="C"):
    """JAX/Pallas equivalent of PatchShift.forward(x, batch_size, frame_len).

    x: (B, num_heads, N, c) with B = batch_size * frame_len * G and N a square.
    """
    B, num_heads, N, c = x.shape
    assert B % (batch_size * frame_len) == 0
    G = B // (batch_size * frame_len)
    N_sqrt = int(math.isqrt(N))
    assert N_sqrt * N_sqrt == N
    fold = int(num_heads * ratio)
    multiplier = -1 if inv else 1
    stride = 1
    period, table = _PATTERNS[pattern]

    # Static per-row shift map (row = (g, head, i, j)).
    shift_rows = np.zeros((G, num_heads, N_sqrt, N_sqrt), dtype=np.int32)
    for (im, jm), base in table.items():
        shift_rows[:, :fold, im::period, jm::period] = base * multiplier * stride
    unique_shifts = tuple(int(s) for s in np.unique(shift_rows) if s != 0)

    # Lane-dense layout when possible: flatten (G, H, N, c) -> (S, 128).
    L = G * num_heads * N * c
    lane = 128 if L % 128 == 0 else c
    S = L // lane
    shift_map = jnp.asarray(
        np.broadcast_to(shift_rows[..., None],
                        (G, num_heads, N_sqrt, N_sqrt, c)).reshape(S, lane))

    itemsize = jnp.dtype(x.dtype).itemsize
    tS = _choose_row_tile(S, frame_len, lane, itemsize)
    num_chunks = S // tS

    # (B, num_heads, N, c) -> (batch, frame_len, S, lane): contiguous reshape,
    # matching torch's view(batch, frame_len, G, H, Ns, Ns, c) element order.
    x_r = x.reshape(batch_size, frame_len, S, lane)

    # Explicit VMEM budget from padded, double-buffered block sizes (+headroom).
    pad_tS = -(-tS // 8) * 8
    pad_lane = -(-lane // 128) * 128
    block_bytes = (2 * frame_len * pad_tS * pad_lane * itemsize   # x  (dbl-buffered)
                   + 2 * frame_len * pad_tS * pad_lane * itemsize  # out (dbl-buffered)
                   + 2 * pad_tS * pad_lane * 4)                    # shift map
    vmem_limit = int(min(48 * 2**20, max(4 * 2**20, 2 * block_bytes)))

    kernel = partial(_patch_shift_kernel, shifts=unique_shifts, frame_len=frame_len)

    out = pl.pallas_call(
        kernel,
        out_shape=jax.ShapeDtypeStruct((batch_size, frame_len, S, lane), x.dtype),
        grid_spec=pltpu.PrefetchScalarGridSpec(
            num_scalar_prefetch=0,
            # row-chunk outermost: the shift-map block index (lc, 0) is constant
            # across the inner batch axis, so its HBM->VMEM copy is elided.
            grid=(num_chunks, batch_size),
            in_specs=[
                # per-element shift map: depends only on the row chunk
                pl.BlockSpec((tS, lane), lambda lc, b: (lc, 0)),
                # all frames of this (batch, row-chunk) (batch dim squeezed)
                pl.BlockSpec((None, frame_len, tS, lane),
                             lambda lc, b: (b, 0, lc, 0)),
            ],
            out_specs=pl.BlockSpec((None, frame_len, tS, lane),
                                   lambda lc, b: (b, 0, lc, 0)),
        ),
        compiler_params=pltpu.CompilerParams(
            dimension_semantics=("parallel", "parallel"),
            vmem_limit_bytes=vmem_limit),
    )(shift_map, x_r)

    return out.reshape(B, num_heads, N, c)


def patch_shift_reference(x, batch_size, frame_len, *, inv=False, ratio=1, pattern="C"):
    """Pure-JAX reference mirroring the PyTorch strided-slice / roll semantics."""
    B, num_heads, N, c = x.shape
    N_sqrt = int(math.isqrt(N))
    fold = int(num_heads * ratio)
    multiplier = -1 if inv else 1
    stride = 1
    period, table = _PATTERNS[pattern]
    feat = x.reshape(batch_size, frame_len, -1, num_heads, N_sqrt, N_sqrt, c)
    out = feat
    for (im, jm), base in table.items():
        s = base * multiplier * stride
        rolled = jnp.roll(feat[:, :, :, :fold, im::period, jm::period, :], s, axis=1)
        out = out.at[:, :, :, :fold, im::period, jm::period, :].set(rolled)
    return out.reshape(B, num_heads, N, c)


if __name__ == "__main__":
    batch_size = 2
    frame_len = 8
    num_heads = 4
    N_sqrt = 6
    N = N_sqrt * N_sqrt
    B = batch_size * frame_len  # G = 1
    key = jax.random.PRNGKey(0)

    # Case 1: lane-dense path (payload % 128 == 0), pattern C, half the heads shifted.
    c = 16
    x = jax.random.normal(key, (B, num_heads, N, c), dtype=jnp.float32)
    y = jax.block_until_ready(
        patch_shift(x, batch_size, frame_len, inv=False, ratio=0.5, pattern="C"))
    y_ref = patch_shift_reference(x, batch_size, frame_len,
                                  inv=False, ratio=0.5, pattern="C")
    assert y.shape == x.shape and y.dtype == x.dtype
    np.testing.assert_allclose(np.asarray(y), np.asarray(y_ref), rtol=0, atol=0)

    # Case 2: lane-sparse fallback (payload % 128 != 0), pattern A, inverted shifts.
    c2 = 12
    x2 = jax.random.normal(jax.random.PRNGKey(0), (B, num_heads, N, c2),
                           dtype=jnp.float32)
    y2 = jax.block_until_ready(
        patch_shift(x2, batch_size, frame_len, inv=True, ratio=1, pattern="A"))
    y2_ref = patch_shift_reference(x2, batch_size, frame_len,
                                   inv=True, ratio=1, pattern="A")
    np.testing.assert_allclose(np.asarray(y2), np.asarray(y2_ref), rtol=0, atol=0)

    # Case 3: pattern D (largest shift set, |s| up to 8 with T = 8 wrap-around).
    y3 = jax.block_until_ready(
        patch_shift(x, batch_size, frame_len, inv=False, ratio=1, pattern="D"))
    y3_ref = patch_shift_reference(x, batch_size, frame_len,
                                   inv=False, ratio=1, pattern="D")
    np.testing.assert_allclose(np.asarray(y3), np.asarray(y3_ref), rtol=0, atol=0)

    print("KERNEL_OK")
</pallas_src>

<mosaic_0001>
module attributes {stable_mosaic.version = 11 : i64} {
  func.func @_patch_shift_kernel(%arg0: i32, %arg1: i32, %arg2: memref<18x128xi32, #tpu.memory_space<vmem>>, %arg3: memref<1x8x18x128xf32, #tpu.memory_space<vmem>>, %arg4: memref<1x8x18x128xf32, #tpu.memory_space<vmem>>) attributes {dimension_semantics = [#tpu.dimension_semantics<parallel>, #tpu.dimension_semantics<parallel>], iteration_bounds = array<i64: 1, 2>, scalar_prefetch = 0 : i64, scratch_operands = 0 : i64, tpu.core_type = #tpu.core_type<tc>, window_params = [{transform_indices = @transform_0, window_bounds = array<i64: 18, 128>}, {transform_indices = @transform_1, window_bounds = array<i64: 1, 8, 18, 128>}, {transform_indices = @transform_2, window_bounds = array<i64: 1, 8, 18, 128>}]} {
    %c0 = arith.constant 0 : index
    %c0_0 = arith.constant 0 : index
    %0 = vector.load %arg2[%c0, %c0_0] : memref<18x128xi32, #tpu.memory_space<vmem>>, vector<18x128xi32>
    %c0_1 = arith.constant 0 : index
    %c0_2 = arith.constant 0 : index
    %c0_3 = arith.constant 0 : index
    %c0_4 = arith.constant 0 : index
    %1 = vector.load %arg3[%c0_1, %c0_2, %c0_3, %c0_4] : memref<1x8x18x128xf32, #tpu.memory_space<vmem>>, vector<1x1x18x128xf32>
    %2 = vector.shape_cast %1 : vector<1x1x18x128xf32> to vector<18x128xf32>
    %c-4_i32 = arith.constant -4 : i32
    %3 = vector.broadcast %c-4_i32 : i32 to vector<18x128xi32>
    %4 = arith.cmpi eq, %0, %3 : vector<18x128xi32>
    %c0_5 = arith.constant 0 : index
    %c4 = arith.constant 4 : index
    %c0_6 = arith.constant 0 : index
    %c0_7 = arith.constant 0 : index
    %5 = vector.load %arg3[%c0_5, %c4, %c0_6, %c0_7] : memref<1x8x18x128xf32, #tpu.memory_space<vmem>>, vector<1x1x18x128xf32>
    %6 = vector.shape_cast %5 : vector<1x1x18x128xf32> to vector<18x128xf32>
    %7 = arith.select %4, %6, %2 : vector<18x128xi1>, vector<18x128xf32>
    %c-3_i32 = arith.constant -3 : i32
    %8 = vector.broadcast %c-3_i32 : i32 to vector<18x128xi32>
    %9 = arith.cmpi eq, %0, %8 : vector<18x128xi32>
    %c0_8 = arith.constant 0 : index
    %c3 = arith.constant 3 : index
    %c0_9 = arith.constant 0 : index
    %c0_10 = arith.constant 0 : index
    %10 = vector.load %arg3[%c0_8, %c3, %c0_9, %c0_10] : memref<1x8x18x128xf32, #tpu.memory_space<vmem>>, vector<1x1x18x128xf32>
    %11 = vector.shape_cast %10 : vector<1x1x18x128xf32> to vector<18x128xf32>
    %12 = arith.select %9, %11, %7 : vector<18x128xi1>, vector<18x128xf32>
    %c-2_i32 = arith.constant -2 : i32
    %13 = vector.broadcast %c-2_i32 : i32 to vector<18x128xi32>
    %14 = arith.cmpi eq, %0, %13 : vector<18x128xi32>
    %c0_11 = arith.constant 0 : index
    %c2 = arith.constant 2 : index
    %c0_12 = arith.constant 0 : index
    %c0_13 = arith.constant 0 : index
    %15 = vector.load %arg3[%c0_11, %c2, %c0_12, %c0_13] : memref<1x8x18x128xf32, #tpu.memory_space<vmem>>, vector<1x1x18x128xf32>
    %16 = vector.shape_cast %15 : vector<1x1x18x128xf32> to vector<18x128xf32>
    %17 = arith.select %14, %16, %12 : vector<18x128xi1>, vector<18x128xf32>
    %c-1_i32 = arith.constant -1 : i32
    %18 = vector.broadcast %c-1_i32 : i32 to vector<18x128xi32>
    %19 = arith.cmpi eq, %0, %18 : vector<18x128xi32>
    %c0_14 = arith.constant 0 : index
    %c1 = arith.constant 1 : index
    %c0_15 = arith.constant 0 : index
    %c0_16 = arith.constant 0 : index
    %20 = vector.load %arg3[%c0_14, %c1, %c0_15, %c0_16] : memref<1x8x18x128xf32, #tpu.memory_space<vmem>>, vector<1x1x18x128xf32>
    %21 = vector.shape_cast %20 : vector<1x1x18x128xf32> to vector<18x128xf32>
    %22 = arith.select %19, %21, %17 : vector<18x128xi1>, vector<18x128xf32>
    %c1_i32 = arith.constant 1 : i32
    %23 = vector.broadcast %c1_i32 : i32 to vector<18x128xi32>
    %24 = arith.cmpi eq, %0, %23 : vector<18x128xi32>
    %c0_17 = arith.constant 0 : index
    %c7 = arith.constant 7 : index
    %c0_18 = arith.constant 0 : index
    %c0_19 = arith.constant 0 : index
    %25 = vector.load %arg3[%c0_17, %c7, %c0_18, %c0_19] : memref<1x8x18x128xf32, #tpu.memory_space<vmem>>, vector<1x1x18x128xf32>
    %26 = vector.shape_cast %25 : vector<1x1x18x128xf32> to vector<18x128xf32>
    %27 = arith.select %24, %26, %22 : vector<18x128xi1>, vector<18x128xf32>
    %c2_i32 = arith.constant 2 : i32
    %28 = vector.broadcast %c2_i32 : i32 to vector<18x128xi32>
    %29 = arith.cmpi eq, %0, %28 : vector<18x128xi32>
    %c0_20 = arith.constant 0 : index
    %c6 = arith.constant 6 : index
    %c0_21 = arith.constant 0 : index
    %c0_22 = arith.constant 0 : index
    %30 = vector.load %arg3[%c0_20, %c6, %c0_21, %c0_22] : memref<1x8x18x128xf32, #tpu.memory_space<vmem>>, vector<1x1x18x128xf32>
    %31 = vector.shape_cast %30 : vector<1x1x18x128xf32> to vector<18x128xf32>
    %32 = arith.select %29, %31, %27 : vector<18x128xi1>, vector<18x128xf32>
    %c3_i32 = arith.constant 3 : i32
    %33 = vector.broadcast %c3_i32 : i32 to vector<18x128xi32>
    %34 = arith.cmpi eq, %0, %33 : vector<18x128xi32>
    %c0_23 = arith.constant 0 : index
    %c5 = arith.constant 5 : index
    %c0_24 = arith.constant 0 : index
    %c0_25 = arith.constant 0 : index
    %35 = vector.load %arg3[%c0_23, %c5, %c0_24, %c0_25] : memref<1x8x18x128xf32, #tpu.memory_space<vmem>>, vector<1x1x18x128xf32>
    %36 = vector.shape_cast %35 : vector<1x1x18x128xf32> to vector<18x128xf32>
    %37 = arith.select %34, %36, %32 : vector<18x128xi1>, vector<18x128xf32>
    %c4_i32 = arith.constant 4 : i32
    %38 = vector.broadcast %c4_i32 : i32 to vector<18x128xi32>
    %39 = arith.cmpi eq, %0, %38 : vector<18x128xi32>
    %c0_26 = arith.constant 0 : index
    %c4_27 = arith.constant 4 : index
    %c0_28 = arith.constant 0 : index
    %c0_29 = arith.constant 0 : index
    %40 = vector.load %arg3[%c0_26, %c4_27, %c0_28, %c0_29] : memref<1x8x18x128xf32, #tpu.memory_space<vmem>>, vector<1x1x18x128xf32>
    %41 = vector.shape_cast %40 : vector<1x1x18x128xf32> to vector<18x128xf32>
    %42 = arith.select %39, %41, %37 : vector<18x128xi1>, vector<18x128xf32>
    %c0_30 = arith.constant 0 : index
    %c0_31 = arith.constant 0 : index
    %c0_32 = arith.constant 0 : index
    %c0_33 = arith.constant 0 : index
    %43 = vector.load %arg4[%c0_30, %c0_31, %c0_32, %c0_33] : memref<1x8x18x128xf32, #tpu.memory_space<vmem>>, vector<1x1x18x128xf32>
    %44 = vector.shape_cast %43 : vector<1x1x18x128xf32> to vector<18x128xf32>
    %45 = vector.shape_cast %42 : vector<18x128xf32> to vector<1x1x18x128xf32>
    tpu.vector_store %arg4[%c0_30, %c0_31, %c0_32, %c0_33], %45 {strides = array<i32>} : memref<1x8x18x128xf32, #tpu.memory_space<vmem>>, vector<1x1x18x128xf32>,
    %c0_34 = arith.constant 0 : index
    %c1_35 = arith.constant 1 : index
    %c0_36 = arith.constant 0 : index
    %c0_37 = arith.constant 0 : index
    %46 = vector.load %arg3[%c0_34, %c1_35, %c0_36, %c0_37] : memref<1x8x18x128xf32, #tpu.memory_space<vmem>>, vector<1x1x18x128xf32>
    %47 = vector.shape_cast %46 : vector<1x1x18x128xf32> to vector<18x128xf32>
    %c-4_i32_38 = arith.constant -4 : i32
    %48 = vector.broadcast %c-4_i32_38 : i32 to vector<18x128xi32>
    %49 = arith.cmpi eq, %0, %48 : vector<18x128xi32>
    %c0_39 = arith.constant 0 : index
    %c5_40 = arith.constant 5 : index
    %c0_41 = arith.constant 0 : index
    %c0_42 = arith.constant 0 : index
    %50 = vector.load %arg3[%c0_39, %c5_40, %c0_41, %c0_42] : memref<1x8x18x128xf32, #tpu.memory_space<vmem>>, vector<1x1x18x128xf32>
    %51 = vector.shape_cast %50 : vector<1x1x18x128xf32> to vector<18x128xf32>
    %52 = arith.select %49, %51, %47 : vector<18x128xi1>, vector<18x128xf32>
    %c-3_i32_43 = arith.constant -3 : i32
    %53 = vector.broadcast %c-3_i32_43 : i32 to vector<18x128xi32>
    %54 = arith.cmpi eq, %0, %53 : vector<18x128xi32>
    %c0_44 = arith.constant 0 : index
    %c4_45 = arith.constant 4 : index
    %c0_46 = arith.constant 0 : index
    %c0_47 = arith.constant 0 : index
    %55 = vector.load %arg3[%c0_44, %c4_45, %c0_46, %c0_47] : memref<1x8x18x128xf32, #tpu.memory_space<vmem>>, vector<1x1x18x128xf32>
    %56 = vector.shape_cast %55 : vector<1x1x18x128xf32> to vector<18x128xf32>
    %57 = arith.select %54, %56, %52 : vector<18x128xi1>, vector<18x128xf32>
    %c-2_i32_48 = arith.constant -2 : i32
    %58 = vector.broadcast %c-2_i32_48 : i32 to vector<18x128xi32>
    %59 = arith.cmpi eq, %0, %58 : vector<18x128xi32>
    %c0_49 = arith.constant 0 : index
    %c3_50 = arith.constant 3 : index
    %c0_51 = arith.constant 0 : index
    %c0_52 = arith.constant 0 : index
    %60 = vector.load %arg3[%c0_49, %c3_50, %c0_51, %c0_52] : memref<1x8x18x128xf32, #tpu.memory_space<vmem>>, vector<1x1x18x128xf32>
    %61 = vector.shape_cast %60 : vector<1x1x18x128xf32> to vector<18x128xf32>
    %62 = arith.select %59, %61, %57 : vector<18x128xi1>, vector<18x128xf32>
    %c-1_i32_53 = arith.constant -1 : i32
    %63 = vector.broadcast %c-1_i32_53 : i32 to vector<18x128xi32>
    %64 = arith.cmpi eq, %0, %63 : vector<18x128xi32>
    %c0_54 = arith.constant 0 : index
    %c2_55 = arith.constant 2 : index
    %c0_56 = arith.constant 0 : index
    %c0_57 = arith.constant 0 : index
    %65 = vector.load %arg3[%c0_54, %c2_55, %c0_56, %c0_57] : memref<1x8x18x128xf32, #tpu.memory_space<vmem>>, vector<1x1x18x128xf32>
    %66 = vector.shape_cast %65 : vector<1x1x18x128xf32> to vector<18x128xf32>
    %67 = arith.select %64, %66, %62 : vector<18x128xi1>, vector<18x128xf32>
    %c1_i32_58 = arith.constant 1 : i32
    %68 = vector.broadcast %c1_i32_58 : i32 to vector<18x128xi32>
    %69 = arith.cmpi eq, %0, %68 : vector<18x128xi32>
    %c0_59 = arith.constant 0 : index
    %c0_60 = arith.constant 0 : index
    %c0_61 = arith.constant 0 : index
    %c0_62 = arith.constant 0 : index
    %70 = vector.load %arg3[%c0_59, %c0_60, %c0_61, %c0_62] : memref<1x8x18x128xf32, #tpu.memory_space<vmem>>, vector<1x1x18x128xf32>
    %71 = vector.shape_cast %70 : vector<1x1x18x128xf32> to vector<18x128xf32>
    %72 = arith.select %69, %71, %67 : vector<18x128xi1>, vector<18x128xf32>
    %c2_i32_63 = arith.constant 2 : i32
    %73 = vector.broadcast %c2_i32_63 : i32 to vector<18x128xi32>
    %74 = arith.cmpi eq, %0, %73 : vector<18x128xi32>
    %c0_64 = arith.constant 0 : index
    %c7_65 = arith.constant 7 : index
    %c0_66 = arith.constant 0 : index
    %c0_67 = arith.constant 0 : index
    %75 = vector.load %arg3[%c0_64, %c7_65, %c0_66, %c0_67] : memref<1x8x18x128xf32, #tpu.memory_space<vmem>>, vector<1x1x18x128xf32>
    %76 = vector.shape_cast %75 : vector<1x1x18x128xf32> to vector<18x128xf32>
    %77 = arith.select %74, %76, %72 : vector<18x128xi1>, vector<18x128xf32>
    %c3_i32_68 = arith.constant 3 : i32
    %78 = vector.broadcast %c3_i32_68 : i32 to vector<18x128xi32>
    %79 = arith.cmpi eq, %0, %78 : vector<18x128xi32>
    %c0_69 = arith.constant 0 : index
    %c6_70 = arith.constant 6 : index
    %c0_71 = arith.constant 0 : index
    %c0_72 = arith.constant 0 : index
    %80 = vector.load %arg3[%c0_69, %c6_70, %c0_71, %c0_72] : memref<1x8x18x128xf32, #tpu.memory_space<vmem>>, vector<1x1x18x128xf32>
    %81 = vector.shape_cast %80 : vector<1x1x18x128xf32> to vector<18x128xf32>
    %82 = arith.select %79, %81, %77 : vector<18x128xi1>, vector<18x128xf32>
    %c4_i32_73 = arith.constant 4 : i32
    %83 = vector.broadcast %c4_i32_73 : i32 to vector<18x128xi32>
    %84 = arith.cmpi eq, %0, %83 : vector<18x128xi32>
    %c0_74 = arith.constant 0 : index
    %c5_75 = arith.constant 5 : index
    %c0_76 = arith.constant 0 : index
    %c0_77 = arith.constant 0 : index
    %85 = vector.load %arg3[%c0_74, %c5_75, %c0_76, %c0_77] : memref<1x8x18x128xf32, #tpu.memory_space<vmem>>, vector<1x1x18x128xf32>
    %86 = vector.shape_cast %85 : vector<1x1x18x128xf32> to vector<18x128xf32>
    %87 = arith.select %84, %86, %82 : vector<18x128xi1>, vector<18x128xf32>
    %c0_78 = arith.constant 0 : index
    %c1_79 = arith.constant 1 : index
    %c0_80 = arith.constant 0 : index
    %c0_81 = arith.constant 0 : index
    %88 = vector.load %arg4[%c0_78, %c1_79, %c0_80, %c0_81] : memref<1x8x18x128xf32, #tpu.memory_space<vmem>>, vector<1x1x18x128xf32>
    %89 = vector.shape_cast %88 : vector<1x1x18x128xf32> to vector<18x128xf32>
    %90 = vector.shape_cast %87 : vector<18x128xf32> to vector<1x1x18x128xf32>
    tpu.vector_store %arg4[%c0_78, %c1_79, %c0_80, %c0_81], %90 {strides = array<i32>} : memref<1x8x18x128xf32, #tpu.memory_space<vmem>>, vector<1x1x18x128xf32>,
    %c0_82 = arith.constant 0 : index
    %c2_83 = arith.constant 2 : index
    %c0_84 = arith.constant 0 : index
    %c0_85 = arith.constant 0 : index
    %91 = vector.load %arg3[%c0_82, %c2_83, %c0_84, %c0_85] : memref<1x8x18x128xf32, #tpu.memory_space<vmem>>, vector<1x1x18x128xf32>
    %92 = vector.shape_cast %91 : vector<1x1x18x128xf32> to vector<18x128xf32>
    %c-4_i32_86 = arith.constant -4 : i32
    %93 = vector.broadcast %c-4_i32_86 : i32 to vector<18x128xi32>
    %94 = arith.cmpi eq, %0, %93 : vector<18x128xi32>
    %c0_87 = arith.constant 0 : index
    %c6_88 = arith.constant 6 : index
    %c0_89 = arith.constant 0 : index
    %c0_90 = arith.constant 0 : index
    %95 = vector.load %arg3[%c0_87, %c6_88, %c0_89, %c0_90] : memref<1x8x18x128xf32, #tpu.memory_space<vmem>>, vector<1x1x18x128xf32>
    %96 = vector.shape_cast %95 : vector<1x1x18x128xf32> to vector<18x128xf32>
    %97 = arith.select %94, %96, %92 : vector<18x128xi1>, vector<18x128xf32>
    %c-3_i32_91 = arith.constant -3 : i32
    %98 = vector.broadcast %c-3_i32_91 : i32 to vector<18x128xi32>
    %99 = arith.cmpi eq, %0, %98 : vector<18x128xi32>
    %c0_92 = arith.constant 0 : index
    %c5_93 = arith.constant 5 : index
    %c0_94 = arith.constant 0 : index
    %c0_95 = arith.constant 0 : index
    %100 = vector.load %arg3[%c0_92, %c5_93, %c0_94, %c0_95] : memref<1x8x18x128xf32, #tpu.memory_space<vmem>>, vector<1x1x18x128xf32>
    %101 = vector.shape_cast %100 : vector<1x1x18x128xf32> to vector<18x128xf32>
    %102 = arith.select %99, %101, %97 : vector<18x128xi1>, vector<18x128xf32>
    %c-2_i32_96 = arith.constant -2 : i32
    %103 = vector.broadcast %c-2_i32_96 : i32 to vector<18x128xi32>
    %104 = arith.cmpi eq, %0, %103 : vector<18x128xi32>
    %c0_97 = arith.constant 0 : index
    %c4_98 = arith.constant 4 : index
    %c0_99 = arith.constant 0 : index
    %c0_100 = arith.constant 0 : index
    %105 = vector.load %arg3[%c0_97, %c4_98, %c0_99, %c0_100] : memref<1x8x18x128xf32, #tpu.memory_space<vmem>>, vector<1x1x18x128xf32>
    %106 = vector.shape_cast %105 : vector<1x1x18x128xf32> to vector<18x128xf32>
    %107 = arith.select %104, %106, %102 : vector<18x128xi1>, vector<18x128xf32>
    %c-1_i32_101 = arith.constant -1 : i32
    %108 = vector.broadcast %c-1_i32_101 : i32 to vector<18x128xi32>
    %109 = arith.cmpi eq, %0, %108 : vector<18x128xi32>
    %c0_102 = arith.constant 0 : index
    %c3_103 = arith.constant 3 : index
    %c0_104 = arith.constant 0 : index
    %c0_105 = arith.constant 0 : index
    %110 = vector.load %arg3[%c0_102, %c3_103, %c0_104, %c0_105] : memref<1x8x18x128xf32, #tpu.memory_space<vmem>>, vector<1x1x18x128xf32>
    %111 = vector.shape_cast %110 : vector<1x1x18x128xf32> to vector<18x128xf32>
    %112 = arith.select %109, %111, %107 : vector<18x128xi1>, vector<18x128xf32>
    %c1_i32_106 = arith.constant 1 : i32
    %113 = vector.broadcast %c1_i32_106 : i32 to vector<18x128xi32>
    %114 = arith.cmpi eq, %0, %113 : vector<18x128xi32>
    %c0_107 = arith.constant 0 : index
    %c1_108 = arith.constant 1 : index
    %c0_109 = arith.constant 0 : index
    %c0_110 = arith.constant 0 : index
    %115 = vector.load %arg3[%c0_107, %c1_108, %c0_109, %c0_110] : memref<1x8x18x128xf32, #tpu.memory_space<vmem>>, vector<1x1x18x128xf32>
    %116 = vector.shape_cast %115 : vector<1x1x18x128xf32> to vector<18x128xf32>
    %117 = arith.select %114, %116, %112 : vector<18x128xi1>, vector<18x128xf32>
    %c2_i32_111 = arith.constant 2 : i32
    %118 = vector.broadcast %c2_i32_111 : i32 to vector<18x128xi32>
    %119 = arith.cmpi eq, %0, %118 : vector<18x128xi32>
    %c0_112 = arith.constant 0 : index
    %c0_113 = arith.constant 0 : index
    %c0_114 = arith.constant 0 : index
    %c0_115 = arith.constant 0 : index
    %120 = vector.load %arg3[%c0_112, %c0_113, %c0_114, %c0_115] : memref<1x8x18x128xf32, #tpu.memory_space<vmem>>, vector<1x1x18x128xf32>
    %121 = vector.shape_cast %120 : vector<1x1x18x128xf32> to vector<18x128xf32>
    %122 = arith.select %119, %121, %117 : vector<18x128xi1>, vector<18x128xf32>
    %c3_i32_116 = arith.constant 3 : i32
    %123 = vector.broadcast %c3_i32_116 : i32 to vector<18x128xi32>
    %124 = arith.cmpi eq, %0, %123 : vector<18x128xi32>
    %c0_117 = arith.constant 0 : index
    %c7_118 = arith.constant 7 : index
    %c0_119 = arith.constant 0 : index
    %c0_120 = arith.constant 0 : index
    %125 = vector.load %arg3[%c0_117, %c7_118, %c0_119, %c0_120] : memref<1x8x18x128xf32, #tpu.memory_space<vmem>>, vector<1x1x18x128xf32>
    %126 = vector.shape_cast %125 : vector<1x1x18x128xf32> to vector<18x128xf32>
    %127 = arith.select %124, %126, %122 : vector<18x128xi1>, vector<18x128xf32>
    %c4_i32_121 = arith.constant 4 : i32
    %128 = vector.broadcast %c4_i32_121 : i32 to vector<18x128xi32>
    %129 = arith.cmpi eq, %0, %128 : vector<18x128xi32>
    %c0_122 = arith.constant 0 : index
    %c6_123 = arith.constant 6 : index
    %c0_124 = arith.constant 0 : index
    %c0_125 = arith.constant 0 : index
    %130 = vector.load %arg3[%c0_122, %c6_123, %c0_124, %c0_125] : memref<1x8x18x128xf32, #tpu.memory_space<vmem>>, vector<1x1x18x128xf32>
    %131 = vector.shape_cast %130 : vector<1x1x18x128xf32> to vector<18x128xf32>
    %132 = arith.select %129, %131, %127 : vector<18x128xi1>, vector<18x128xf32>
    %c0_126 = arith.constant 0 : index
    %c2_127 = arith.constant 2 : index
    %c0_128 = arith.constant 0 : index
    %c0_129 = arith.constant 0 : index
    %133 = vector.load %arg4[%c0_126, %c2_127, %c0_128, %c0_129] : memref<1x8x18x128xf32, #tpu.memory_space<vmem>>, vector<1x1x18x128xf32>
    %134 = vector.shape_cast %133 : vector<1x1x18x128xf32> to vector<18x128xf32>
    %135 = vector.shape_cast %132 : vector<18x128xf32> to vector<1x1x18x128xf32>
    tpu.vector_store %arg4[%c0_126, %c2_127, %c0_128, %c0_129], %135 {strides = array<i32>} : memref<1x8x18x128xf32, #tpu.memory_space<vmem>>, vector<1x1x18x128xf32>,
    %c0_130 = arith.constant 0 : index
    %c3_131 = arith.constant 3 : index
    %c0_132 = arith.constant 0 : index
    %c0_133 = arith.constant 0 : index
    %136 = vector.load %arg3[%c0_130, %c3_131, %c0_132, %c0_133] : memref<1x8x18x128xf32, #tpu.memory_space<vmem>>, vector<1x1x18x128xf32>
    %137 = vector.shape_cast %136 : vector<1x1x18x128xf32> to vector<18x128xf32>
    %c-4_i32_134 = arith.constant -4 : i32
    %138 = vector.broadcast %c-4_i32_134 : i32 to vector<18x128xi32>
    %139 = arith.cmpi eq, %0, %138 : vector<18x128xi32>
    %c0_135 = arith.constant 0 : index
    %c7_136 = arith.constant 7 : index
    %c0_137 = arith.constant 0 : index
    %c0_138 = arith.constant 0 : index
    %140 = vector.load %arg3[%c0_135, %c7_136, %c0_137, %c0_138] : memref<1x8x18x128xf32, #tpu.memory_space<vmem>>, vector<1x1x18x128xf32>
    %141 = vector.shape_cast %140 : vector<1x1x18x128xf32> to vector<18x128xf32>
    %142 = arith.select %139, %141, %137 : vector<18x128xi1>, vector<18x128xf32>
    %c-3_i32_139 = arith.constant -3 : i32
    %143 = vector.broadcast %c-3_i32_139 : i32 to vector<18x128xi32>
    %144 = arith.cmpi eq, %0, %143 : vector<18x128xi32>
    %c0_140 = arith.constant 0 : index
    %c6_141 = arith.constant 6 : index
    %c0_142 = arith.constant 0 : index
    %c0_143 = arith.constant 0 : index
    %145 = vector.load %arg3[%c0_140, %c6_141, %c0_142, %c0_143] : memref<1x8x18x128xf32, #tpu.memory_space<vmem>>, vector<1x1x18x128xf32>
    %146 = vector.shape_cast %145 : vector<1x1x18x128xf32> to vector<18x128xf32>
    %147 = arith.select %144, %146, %142 : vector<18x128xi1>, vector<18x128xf32>
    %c-2_i32_144 = arith.constant -2 : i32
    %148 = vector.broadcast %c-2_i32_144 : i32 to vector<18x128xi32>
    %149 = arith.cmpi eq, %0, %148 : vector<18x128xi32>
    %c0_145 = arith.constant 0 : index
    %c5_146 = arith.constant 5 : index
    %c0_147 = arith.constant 0 : index
    %c0_148 = arith.constant 0 : index
    %150 = vector.load %arg3[%c0_145, %c5_146, %c0_147, %c0_148] : memref<1x8x18x128xf32, #tpu.memory_space<vmem>>, vector<1x1x18x128xf32>
    %151 = vector.shape_cast %150 : vector<1x1x18x128xf32> to vector<18x128xf32>
    %152 = arith.select %149, %151, %147 : vector<18x128xi1>, vector<18x128xf32>
    %c-1_i32_149 = arith.constant -1 : i32
    %153 = vector.broadcast %c-1_i32_149 : i32 to vector<18x128xi32>
    %154 = arith.cmpi eq, %0, %153 : vector<18x128xi32>
    %c0_150 = arith.constant 0 : index
    %c4_151 = arith.constant 4 : index
    %c0_152 = arith.constant 0 : index
    %c0_153 = arith.constant 0 : index
    %155 = vector.load %arg3[%c0_150, %c4_151, %c0_152, %c0_153] : memref<1x8x18x128xf32, #tpu.memory_space<vmem>>, vector<1x1x18x128xf32>
    %156 = vector.shape_cast %155 : vector<1x1x18x128xf32> to vector<18x128xf32>
    %157 = arith.select %154, %156, %152 : vector<18x128xi1>, vector<18x128xf32>
    %c1_i32_154 = arith.constant 1 : i32
    %158 = vector.broadcast %c1_i32_154 : i32 to vector<18x128xi32>
    %159 = arith.cmpi eq, %0, %158 : vector<18x128xi32>
    %c0_155 = arith.constant 0 : index
    %c2_156 = arith.constant 2 : index
    %c0_157 = arith.constant 0 : index
    %c0_158 = arith.constant 0 : index
    %160 = vector.load %arg3[%c0_155, %c2_156, %c0_157, %c0_158] : memref<1x8x18x128xf32, #tpu.memory_space<vmem>>, vector<1x1x18x128xf32>
    %161 = vector.shape_cast %160 : vector<1x1x18x128xf32> to vector<18x128xf32>
    %162 = arith.select %159, %161, %157 : vector<18x128xi1>, vector<18x128xf32>
    %c2_i32_159 = arith.constant 2 : i32
    %163 = vector.broadcast %c2_i32_159 : i32 to vector<18x128xi32>
    %164 = arith.cmpi eq, %0, %163 : vector<18x128xi32>
    %c0_160 = arith.constant 0 : index
    %c1_161 = arith.constant 1 : index
    %c0_162 = arith.constant 0 : index
    %c0_163 = arith.constant 0 : index
    %165 = vector.load %arg3[%c0_160, %c1_161, %c0_162, %c0_163] : memref<1x8x18x128xf32, #tpu.memory_space<vmem>>, vector<1x1x18x128xf32>
    %166 = vector.shape_cast %165 : vector<1x1x18x128xf32> to vector<18x128xf32>
    %167 = arith.select %164, %166, %162 : vector<18x128xi1>, vector<18x128xf32>
    %c3_i32_164 = arith.constant 3 : i32
    %168 = vector.broadcast %c3_i32_164 : i32 to vector<18x128xi32>
    %169 = arith.cmpi eq, %0, %168 : vector<18x128xi32>
    %c0_165 = arith.constant 0 : index
    %c0_166 = arith.constant 0 : index
    %c0_167 = arith.constant 0 : index
    %c0_168 = arith.constant 0 : index
    %170 = vector.load %arg3[%c0_165, %c0_166, %c0_167, %c0_168] : memref<1x8x18x128xf32, #tpu.memory_space<vmem>>, vector<1x1x18x128xf32>
    %171 = vector.shape_cast %170 : vector<1x1x18x128xf32> to vector<18x128xf32>
    %172 = arith.select %169, %171, %167 : vector<18x128xi1>, vector<18x128xf32>
    %c4_i32_169 = arith.constant 4 : i32
    %173 = vector.broadcast %c4_i32_169 : i32 to vector<18x128xi32>
    %174 = arith.cmpi eq, %0, %173 : vector<18x128xi32>
    %c0_170 = arith.constant 0 : index
    %c7_171 = arith.constant 7 : index
    %c0_172 = arith.constant 0 : index
    %c0_173 = arith.constant 0 : index
    %175 = vector.load %arg3[%c0_170, %c7_171, %c0_172, %c0_173] : memref<1x8x18x128xf32, #tpu.memory_space<vmem>>, vector<1x1x18x128xf32>
    %176 = vector.shape_cast %175 : vector<1x1x18x128xf32> to vector<18x128xf32>
    %177 = arith.select %174, %176, %172 : vector<18x128xi1>, vector<18x128xf32>
    %c0_174 = arith.constant 0 : index
    %c3_175 = arith.constant 3 : index
    %c0_176 = arith.constant 0 : index
    %c0_177 = arith.constant 0 : index
    %178 = vector.load %arg4[%c0_174, %c3_175, %c0_176, %c0_177] : memref<1x8x18x128xf32, #tpu.memory_space<vmem>>, vector<1x1x18x128xf32>
    %179 = vector.shape_cast %178 : vector<1x1x18x128xf32> to vector<18x128xf32>
    %180 = vector.shape_cast %177 : vector<18x128xf32> to vector<1x1x18x128xf32>
    tpu.vector_store %arg4[%c0_174, %c3_175, %c0_176, %c0_177], %180 {strides = array<i32>} : memref<1x8x18x128xf32, #tpu.memory_space<vmem>>, vector<1x1x18x128xf32>,
    %c0_178 = arith.constant 0 : index
    %c4_179 = arith.constant 4 : index
    %c0_180 = arith.constant 0 : index
    %c0_181 = arith.constant 0 : index
    %181 = vector.load %arg3[%c0_178, %c4_179, %c0_180, %c0_181] : memref<1x8x18x128xf32, #tpu.memory_space<vmem>>, vector<1x1x18x128xf32>
    %182 = vector.shape_cast %181 : vector<1x1x18x128xf32> to vector<18x128xf32>
    %c-4_i32_182 = arith.constant -4 : i32
    %183 = vector.broadcast %c-4_i32_182 : i32 to vector<18x128xi32>
    %184 = arith.cmpi eq, %0, %183 : vector<18x128xi32>
    %c0_183 = arith.constant 0 : index
    %c0_184 = arith.constant 0 : index
    %c0_185 = arith.constant 0 : index
    %c0_186 = arith.constant 0 : index
    %185 = vector.load %arg3[%c0_183, %c0_184, %c0_185, %c0_186] : memref<1x8x18x128xf32, #tpu.memory_space<vmem>>, vector<1x1x18x128xf32>
    %186 = vector.shape_cast %185 : vector<1x1x18x128xf32> to vector<18x128xf32>
    %187 = arith.select %184, %186, %182 : vector<18x128xi1>, vector<18x128xf32>
    %c-3_i32_187 = arith.constant -3 : i32
    %188 = vector.broadcast %c-3_i32_187 : i32 to vector<18x128xi32>
    %189 = arith.cmpi eq, %0, %188 : vector<18x128xi32>
    %c0_188 = arith.constant 0 : index
    %c7_189 = arith.constant 7 : index
    %c0_190 = arith.constant 0 : index
    %c0_191 = arith.constant 0 : index
    %190 = vector.load %arg3[%c0_188, %c7_189, %c0_190, %c0_191] : memref<1x8x18x128xf32, #tpu.memory_space<vmem>>, vector<1x1x18x128xf32>
    %191 = vector.shape_cast %190 : vector<1x1x18x128xf32> to vector<18x128xf32>
    %192 = arith.select %189, %191, %187 : vector<18x128xi1>, vector<18x128xf32>
    %c-2_i32_192 = arith.constant -2 : i32
    %193 = vector.broadcast %c-2_i32_192 : i32 to vector<18x128xi32>
    %194 = arith.cmpi eq, %0, %193 : vector<18x128xi32>
    %c0_193 = arith.constant 0 : index
    %c6_194 = arith.constant 6 : index
    %c0_195 = arith.constant 0 : index
    %c0_196 = arith.constant 0 : index
    %195 = vector.load %arg3[%c0_193, %c6_194, %c0_195, %c0_196] : memref<1x8x18x128xf32, #tpu.memory_space<vmem>>, vector<1x1x18x128xf32>
    %196 = vector.shape_cast %195 : vector<1x1x18x128xf32> to vector<18x128xf32>
    %197 = arith.select %194, %196, %192 : vector<18x128xi1>, vector<18x128xf32>
    %c-1_i32_197 = arith.constant -1 : i32
    %198 = vector.broadcast %c-1_i32_197 : i32 to vector<18x128xi32>
    %199 = arith.cmpi eq, %0, %198 : vector<18x128xi32>
    %c0_198 = arith.constant 0 : index
    %c5_199 = arith.constant 5 : index
    %c0_200 = arith.constant 0 : index
    %c0_201 = arith.constant 0 : index
    %200 = vector.load %arg3[%c0_198, %c5_199, %c0_200, %c0_201] : memref<1x8x18x128xf32, #tpu.memory_space<vmem>>, vector<1x1x18x128xf32>
    %201 = vector.shape_cast %200 : vector<1x1x18x128xf32> to vector<18x128xf32>
    %202 = arith.select %199, %201, %197 : vector<18x128xi1>, vector<18x128xf32>
    %c1_i32_202 = arith.constant 1 : i32
    %203 = vector.broadcast %c1_i32_202 : i32 to vector<18x128xi32>
    %204 = arith.cmpi eq, %0, %203 : vector<18x128xi32>
    %c0_203 = arith.constant 0 : index
    %c3_204 = arith.constant 3 : index
    %c0_205 = arith.constant 0 : index
    %c0_206 = arith.constant 0 : index
    %205 = vector.load %arg3[%c0_203, %c3_204, %c0_205, %c0_206] : memref<1x8x18x128xf32, #tpu.memory_space<vmem>>, vector<1x1x18x128xf32>
    %206 = vector.shape_cast %205 : vector<1x1x18x128xf32> to vector<18x128xf32>
    %207 = arith.select %204, %206, %202 : vector<18x128xi1>, vector<18x128xf32>
    %c2_i32_207 = arith.constant 2 : i32
    %208 = vector.broadcast %c2_i32_207 : i32 to vector<18x128xi32>
    %209 = arith.cmpi eq, %0, %208 : vector<18x128xi32>
    %c0_208 = arith.constant 0 : index
    %c2_209 = arith.constant 2 : index
    %c0_210 = arith.constant 0 : index
    %c0_211 = arith.constant 0 : index
    %210 = vector.load %arg3[%c0_208, %c2_209, %c0_210, %c0_211] : memref<1x8x18x128xf32, #tpu.memory_space<vmem>>, vector<1x1x18x128xf32>
    %211 = vector.shape_cast %210 : vector<1x1x18x128xf32> to vector<18x128xf32>
    %212 = arith.select %209, %211, %207 : vector<18x128xi1>, vector<18x128xf32>
    %c3_i32_212 = arith.constant 3 : i32
    %213 = vector.broadcast %c3_i32_212 : i32 to vector<18x128xi32>
    %214 = arith.cmpi eq, %0, %213 : vector<18x128xi32>
    %c0_213 = arith.constant 0 : index
    %c1_214 = arith.constant 1 : index
    %c0_215 = arith.constant 0 : index
    %c0_216 = arith.constant 0 : index
    %215 = vector.load %arg3[%c0_213, %c1_214, %c0_215, %c0_216] : memref<1x8x18x128xf32, #tpu.memory_space<vmem>>, vector<1x1x18x128xf32>
    %216 = vector.shape_cast %215 : vector<1x1x18x128xf32> to vector<18x128xf32>
    %217 = arith.select %214, %216, %212 : vector<18x128xi1>, vector<18x128xf32>
    %c4_i32_217 = arith.constant 4 : i32
    %218 = vector.broadcast %c4_i32_217 : i32 to vector<18x128xi32>
    %219 = arith.cmpi eq, %0, %218 : vector<18x128xi32>
    %c0_218 = arith.constant 0 : index
    %c0_219 = arith.constant 0 : index
    %c0_220 = arith.constant 0 : index
    %c0_221 = arith.constant 0 : index
    %220 = vector.load %arg3[%c0_218, %c0_219, %c0_220, %c0_221] : memref<1x8x18x128xf32, #tpu.memory_space<vmem>>, vector<1x1x18x128xf32>
    %221 = vector.shape_cast %220 : vector<1x1x18x128xf32> to vector<18x128xf32>
    %222 = arith.select %219, %221, %217 : vector<18x128xi1>, vector<18x128xf32>
    %c0_222 = arith.constant 0 : index
    %c4_223 = arith.constant 4 : index
    %c0_224 = arith.constant 0 : index
    %c0_225 = arith.constant 0 : index
    %223 = vector.load %arg4[%c0_222, %c4_223, %c0_224, %c0_225] : memref<1x8x18x128xf32, #tpu.memory_space<vmem>>, vector<1x1x18x128xf32>
    %224 = vector.shape_cast %223 : vector<1x1x18x128xf32> to vector<18x128xf32>
    %225 = vector.shape_cast %222 : vector<18x128xf32> to vector<1x1x18x128xf32>
    tpu.vector_store %arg4[%c0_222, %c4_223, %c0_224, %c0_225], %225 {strides = array<i32>} : memref<1x8x18x128xf32, #tpu.memory_space<vmem>>, vector<1x1x18x128xf32>,
    %c0_226 = arith.constant 0 : index
    %c5_227 = arith.constant 5 : index
    %c0_228 = arith.constant 0 : index
    %c0_229 = arith.constant 0 : index
    %226 = vector.load %arg3[%c0_226, %c5_227, %c0_228, %c0_229] : memref<1x8x18x128xf32, #tpu.memory_space<vmem>>, vector<1x1x18x128xf32>
    %227 = vector.shape_cast %226 : vector<1x1x18x128xf32> to vector<18x128xf32>
    %c-4_i32_230 = arith.constant -4 : i32
    %228 = vector.broadcast %c-4_i32_230 : i32 to vector<18x128xi32>
    %229 = arith.cmpi eq, %0, %228 : vector<18x128xi32>
    %c0_231 = arith.constant 0 : index
    %c1_232 = arith.constant 1 : index
    %c0_233 = arith.constant 0 : index
    %c0_234 = arith.constant 0 : index
    %230 = vector.load %arg3[%c0_231, %c1_232, %c0_233, %c0_234] : memref<1x8x18x128xf32, #tpu.memory_space<vmem>>, vector<1x1x18x128xf32>
    %231 = vector.shape_cast %230 : vector<1x1x18x128xf32> to vector<18x128xf32>
    %232 = arith.select %229, %231, %227 : vector<18x128xi1>, vector<18x128xf32>
    %c-3_i32_235 = arith.constant -3 : i32
    %233 = vector.broadcast %c-3_i32_235 : i32 to vector<18x128xi32>
    %234 = arith.cmpi eq, %0, %233 : vector<18x128xi32>
    %c0_236 = arith.constant 0 : index
    %c0_237 = arith.constant 0 : index
    %c0_238 = arith.constant 0 : index
    %c0_239 = arith.constant 0 : index
    %235 = vector.load %arg3[%c0_236, %c0_237, %c0_238, %c0_239] : memref<1x8x18x128xf32, #tpu.memory_space<vmem>>, vector<1x1x18x128xf32>
    %236 = vector.shape_cast %235 : vector<1x1x18x128xf32> to vector<18x128xf32>
    %237 = arith.select %234, %236, %232 : vector<18x128xi1>, vector<18x128xf32>
    %c-2_i32_240 = arith.constant -2 : i32
    %238 = vector.broadcast %c-2_i32_240 : i32 to vector<18x128xi32>
    %239 = arith.cmpi eq, %0, %238 : vector<18x128xi32>
    %c0_241 = arith.constant 0 : index
    %c7_242 = arith.constant 7 : index
    %c0_243 = arith.constant 0 : index
    %c0_244 = arith.constant 0 : index
    %240 = vector.load %arg3[%c0_241, %c7_242, %c0_243, %c0_244] : memref<1x8x18x128xf32, #tpu.memory_space<vmem>>, vector<1x1x18x128xf32>
    %241 = vector.shape_cast %240 : vector<1x1x18x128xf32> to vector<18x128xf32>
    %242 = arith.select %239, %241, %237 : vector<18x128xi1>, vector<18x128xf32>
    %c-1_i32_245 = arith.constant -1 : i32
    %243 = vector.broadcast %c-1_i32_245 : i32 to vector<18x128xi32>
    %244 = arith.cmpi eq, %0, %243 : vector<18x128xi32>
    %c0_246 = arith.constant 0 : index
    %c6_247 = arith.constant 6 : index
    %c0_248 = arith.constant 0 : index
    %c0_249 = arith.constant 0 : index
    %245 = vector.load %arg3[%c0_246, %c6_247, %c0_248, %c0_249] : memref<1x8x18x128xf32, #tpu.memory_space<vmem>>, vector<1x1x18x128xf32>
    %246 = vector.shape_cast %245 : vector<1x1x18x128xf32> to vector<18x128xf32>
    %247 = arith.select %244, %246, %242 : vector<18x128xi1>, vector<18x128xf32>
    %c1_i32_250 = arith.constant 1 : i32
    %248 = vector.broadcast %c1_i32_250 : i32 to vector<18x128xi32>
    %249 = arith.cmpi eq, %0, %248 : vector<18x128xi32>
    %c0_251 = arith.constant 0 : index
    %c4_252 = arith.constant 4 : index
    %c0_253 = arith.constant 0 : index
    %c0_254 = arith.constant 0 : index
    %250 = vector.load %arg3[%c0_251, %c4_252, %c0_253, %c0_254] : memref<1x8x18x128xf32, #tpu.memory_space<vmem>>, vector<1x1x18x128xf32>
    %251 = vector.shape_cast %250 : vector<1x1x18x128xf32> to vector<18x128xf32>
    %252 = arith.select %249, %251, %247 : vector<18x128xi1>, vector<18x128xf32>
    %c2_i32_255 = arith.constant 2 : i32
    %253 = vector.broadcast %c2_i32_255 : i32 to vector<18x128xi32>
    %254 = arith.cmpi eq, %0, %253 : vector<18x128xi32>
    %c0_256 = arith.constant 0 : index
    %c3_257 = arith.constant 3 : index
    %c0_258 = arith.constant 0 : index
    %c0_259 = arith.constant 0 : index
    %255 = vector.load %arg3[%c0_256, %c3_257, %c0_258, %c0_259] : memref<1x8x18x128xf32, #tpu.memory_space<vmem>>, vector<1x1x18x128xf32>
    %256 = vector.shape_cast %255 : vector<1x1x18x128xf32> to vector<18x128xf32>
    %257 = arith.select %254, %256, %252 : vector<18x128xi1>, vector<18x128xf32>
    %c3_i32_260 = arith.constant 3 : i32
    %258 = vector.broadcast %c3_i32_260 : i32 to vector<18x128xi32>
    %259 = arith.cmpi eq, %0, %258 : vector<18x128xi32>
    %c0_261 = arith.constant 0 : index
    %c2_262 = arith.constant 2 : index
    %c0_263 = arith.constant 0 : index
    %c0_264 = arith.constant 0 : index
    %260 = vector.load %arg3[%c0_261, %c2_262, %c0_263, %c0_264] : memref<1x8x18x128xf32, #tpu.memory_space<vmem>>, vector<1x1x18x128xf32>
    %261 = vector.shape_cast %260 : vector<1x1x18x128xf32> to vector<18x128xf32>
    %262 = arith.select %259, %261, %257 : vector<18x128xi1>, vector<18x128xf32>
    %c4_i32_265 = arith.constant 4 : i32
    %263 = vector.broadcast %c4_i32_265 : i32 to vector<18x128xi32>
    %264 = arith.cmpi eq, %0, %263 : vector<18x128xi32>
    %c0_266 = arith.constant 0 : index
    %c1_267 = arith.constant 1 : index
    %c0_268 = arith.constant 0 : index
    %c0_269 = arith.constant 0 : index
    %265 = vector.load %arg3[%c0_266, %c1_267, %c0_268, %c0_269] : memref<1x8x18x128xf32, #tpu.memory_space<vmem>>, vector<1x1x18x128xf32>
    %266 = vector.shape_cast %265 : vector<1x1x18x128xf32> to vector<18x128xf32>
    %267 = arith.select %264, %266, %262 : vector<18x128xi1>, vector<18x128xf32>
    %c0_270 = arith.constant 0 : index
    %c5_271 = arith.constant 5 : index
    %c0_272 = arith.constant 0 : index
    %c0_273 = arith.constant 0 : index
    %268 = vector.load %arg4[%c0_270, %c5_271, %c0_272, %c0_273] : memref<1x8x18x128xf32, #tpu.memory_space<vmem>>, vector<1x1x18x128xf32>
    %269 = vector.shape_cast %268 : vector<1x1x18x128xf32> to vector<18x128xf32>
    %270 = vector.shape_cast %267 : vector<18x128xf32> to vector<1x1x18x128xf32>
    tpu.vector_store %arg4[%c0_270, %c5_271, %c0_272, %c0_273], %270 {strides = array<i32>} : memref<1x8x18x128xf32, #tpu.memory_space<vmem>>, vector<1x1x18x128xf32>,
    %c0_274 = arith.constant 0 : index
    %c6_275 = arith.constant 6 : index
    %c0_276 = arith.constant 0 : index
    %c0_277 = arith.constant 0 : index
    %271 = vector.load %arg3[%c0_274, %c6_275, %c0_276, %c0_277] : memref<1x8x18x128xf32, #tpu.memory_space<vmem>>, vector<1x1x18x128xf32>
    %272 = vector.shape_cast %271 : vector<1x1x18x128xf32> to vector<18x128xf32>
    %c-4_i32_278 = arith.constant -4 : i32
    %273 = vector.broadcast %c-4_i32_278 : i32 to vector<18x128xi32>
    %274 = arith.cmpi eq, %0, %273 : vector<18x128xi32>
    %c0_279 = arith.constant 0 : index
    %c2_280 = arith.constant 2 : index
    %c0_281 = arith.constant 0 : index
    %c0_282 = arith.constant 0 : index
    %275 = vector.load %arg3[%c0_279, %c2_280, %c0_281, %c0_282] : memref<1x8x18x128xf32, #tpu.memory_space<vmem>>, vector<1x1x18x128xf32>
    %276 = vector.shape_cast %275 : vector<1x1x18x128xf32> to vector<18x128xf32>
    %277 = arith.select %274, %276, %272 : vector<18x128xi1>, vector<18x128xf32>
    %c-3_i32_283 = arith.constant -3 : i32
    %278 = vector.broadcast %c-3_i32_283 : i32 to vector<18x128xi32>
    %279 = arith.cmpi eq, %0, %278 : vector<18x128xi32>
    %c0_284 = arith.constant 0 : index
    %c1_285 = arith.constant 1 : index
    %c0_286 = arith.constant 0 : index
    %c0_287 = arith.constant 0 : index
    %280 = vector.load %arg3[%c0_284, %c1_285, %c0_286, %c0_287] : memref<1x8x18x128xf32, #tpu.memory_space<vmem>>, vector<1x1x18x128xf32>
    %281 = vector.shape_cast %280 : vector<1x1x18x128xf32> to vector<18x128xf32>
    %282 = arith.select %279, %281, %277 : vector<18x128xi1>, vector<18x128xf32>
    %c-2_i32_288 = arith.constant -2 : i32
    %283 = vector.broadcast %c-2_i32_288 : i32 to vector<18x128xi32>
    %284 = arith.cmpi eq, %0, %283 : vector<18x128xi32>
    %c0_289 = arith.constant 0 : index
    %c0_290 = arith.constant 0 : index
    %c0_291 = arith.constant 0 : index
    %c0_292 = arith.constant 0 : index
    %285 = vector.load %arg3[%c0_289, %c0_290, %c0_291, %c0_292] : memref<1x8x18x128xf32, #tpu.memory_space<vmem>>, vector<1x1x18x128xf32>
    %286 = vector.shape_cast %285 : vector<1x1x18x128xf32> to vector<18x128xf32>
    %287 = arith.select %284, %286, %282 : vector<18x128xi1>, vector<18x128xf32>
    %c-1_i32_293 = arith.constant -1 : i32
    %288 = vector.broadcast %c-1_i32_293 : i32 to vector<18x128xi32>
    %289 = arith.cmpi eq, %0, %288 : vector<18x128xi32>
    %c0_294 = arith.constant 0 : index
    %c7_295 = arith.constant 7 : index
    %c0_296 = arith.constant 0 : index
    %c0_297 = arith.constant 0 : index
    %290 = vector.load %arg3[%c0_294, %c7_295, %c0_296, %c0_297] : memref<1x8x18x128xf32, #tpu.memory_space<vmem>>, vector<1x1x18x128xf32>
    %291 = vector.shape_cast %290 : vector<1x1x18x128xf32> to vector<18x128xf32>
    %292 = arith.select %289, %291, %287 : vector<18x128xi1>, vector<18x128xf32>
    %c1_i32_298 = arith.constant 1 : i32
    %293 = vector.broadcast %c1_i32_298 : i32 to vector<18x128xi32>
    %294 = arith.cmpi eq, %0, %293 : vector<18x128xi32>
    %c0_299 = arith.constant 0 : index
    %c5_300 = arith.constant 5 : index
    %c0_301 = arith.constant 0 : index
    %c0_302 = arith.constant 0 : index
    %295 = vector.load %arg3[%c0_299, %c5_300, %c0_301, %c0_302] : memref<1x8x18x128xf32, #tpu.memory_space<vmem>>, vector<1x1x18x128xf32>
    %296 = vector.shape_cast %295 : vector<1x1x18x128xf32> to vector<18x128xf32>
    %297 = arith.select %294, %296, %292 : vector<18x128xi1>, vector<18x128xf32>
    %c2_i32_303 = arith.constant 2 : i32
    %298 = vector.broadcast %c2_i32_303 : i32 to vector<18x128xi32>
    %299 = arith.cmpi eq, %0, %298 : vector<18x128xi32>
    %c0_304 = arith.constant 0 : index
    %c4_305 = arith.constant 4 : index
    %c0_306 = arith.constant 0 : index
    %c0_307 = arith.constant 0 : index
    %300 = vector.load %arg3[%c0_304, %c4_305, %c0_306, %c0_307] : memref<1x8x18x128xf32, #tpu.memory_space<vmem>>, vector<1x1x18x128xf32>
    %301 = vector.shape_cast %300 : vector<1x1x18x128xf32> to vector<18x128xf32>
    %302 = arith.select %299, %301, %297 : vector<18x128xi1>, vector<18x128xf32>
    %c3_i32_308 = arith.constant 3 : i32
    %303 = vector.broadcast %c3_i32_308 : i32 to vector<18x128xi32>
    %304 = arith.cmpi eq, %0, %303 : vector<18x128xi32>
    %c0_309 = arith.constant 0 : index
    %c3_310 = arith.constant 3 : index
    %c0_311 = arith.constant 0 : index
    %c0_312 = arith.constant 0 : index
    %305 = vector.load %arg3[%c0_309, %c3_310, %c0_311, %c0_312] : memref<1x8x18x128xf32, #tpu.memory_space<vmem>>, vector<1x1x18x128xf32>
    %306 = vector.shape_cast %305 : vector<1x1x18x128xf32> to vector<18x128xf32>
    %307 = arith.select %304, %306, %302 : vector<18x128xi1>, vector<18x128xf32>
    %c4_i32_313 = arith.constant 4 : i32
    %308 = vector.broadcast %c4_i32_313 : i32 to vector<18x128xi32>
    %309 = arith.cmpi eq, %0, %308 : vector<18x128xi32>
    %c0_314 = arith.constant 0 : index
    %c2_315 = arith.constant 2 : index
    %c0_316 = arith.constant 0 : index
    %c0_317 = arith.constant 0 : index
    %310 = vector.load %arg3[%c0_314, %c2_315, %c0_316, %c0_317] : memref<1x8x18x128xf32, #tpu.memory_space<vmem>>, vector<1x1x18x128xf32>
    %311 = vector.shape_cast %310 : vector<1x1x18x128xf32> to vector<18x128xf32>
    %312 = arith.select %309, %311, %307 : vector<18x128xi1>, vector<18x128xf32>
    %c0_318 = arith.constant 0 : index
    %c6_319 = arith.constant 6 : index
    %c0_320 = arith.constant 0 : index
    %c0_321 = arith.constant 0 : index
    %313 = vector.load %arg4[%c0_318, %c6_319, %c0_320, %c0_321] : memref<1x8x18x128xf32, #tpu.memory_space<vmem>>, vector<1x1x18x128xf32>
    %314 = vector.shape_cast %313 : vector<1x1x18x128xf32> to vector<18x128xf32>
    %315 = vector.shape_cast %312 : vector<18x128xf32> to vector<1x1x18x128xf32>
    tpu.vector_store %arg4[%c0_318, %c6_319, %c0_320, %c0_321], %315 {strides = array<i32>} : memref<1x8x18x128xf32, #tpu.memory_space<vmem>>, vector<1x1x18x128xf32>,
    %c0_322 = arith.constant 0 : index
    %c7_323 = arith.constant 7 : index
    %c0_324 = arith.constant 0 : index
    %c0_325 = arith.constant 0 : index
    %316 = vector.load %arg3[%c0_322, %c7_323, %c0_324, %c0_325] : memref<1x8x18x128xf32, #tpu.memory_space<vmem>>, vector<1x1x18x128xf32>
    %317 = vector.shape_cast %316 : vector<1x1x18x128xf32> to vector<18x128xf32>
    %c-4_i32_326 = arith.constant -4 : i32
    %318 = vector.broadcast %c-4_i32_326 : i32 to vector<18x128xi32>
    %319 = arith.cmpi eq, %0, %318 : vector<18x128xi32>
    %c0_327 = arith.constant 0 : index
    %c3_328 = arith.constant 3 : index
    %c0_329 = arith.constant 0 : index
    %c0_330 = arith.constant 0 : index
    %320 = vector.load %arg3[%c0_327, %c3_328, %c0_329, %c0_330] : memref<1x8x18x128xf32, #tpu.memory_space<vmem>>, vector<1x1x18x128xf32>
    %321 = vector.shape_cast %320 : vector<1x1x18x128xf32> to vector<18x128xf32>
    %322 = arith.select %319, %321, %317 : vector<18x128xi1>, vector<18x128xf32>
    %c-3_i32_331 = arith.constant -3 : i32
    %323 = vector.broadcast %c-3_i32_331 : i32 to vector<18x128xi32>
    %324 = arith.cmpi eq, %0, %323 : vector<18x128xi32>
    %c0_332 = arith.constant 0 : index
    %c2_333 = arith.constant 2 : index
    %c0_334 = arith.constant 0 : index
    %c0_335 = arith.constant 0 : index
    %325 = vector.load %arg3[%c0_332, %c2_333, %c0_334, %c0_335] : memref<1x8x18x128xf32, #tpu.memory_space<vmem>>, vector<1x1x18x128xf32>
    %326 = vector.shape_cast %325 : vector<1x1x18x128xf32> to vector<18x128xf32>
    %327 = arith.select %324, %326, %322 : vector<18x128xi1>, vector<18x128xf32>
    %c-2_i32_336 = arith.constant -2 : i32
    %328 = vector.broadcast %c-2_i32_336 : i32 to vector<18x128xi32>
    %329 = arith.cmpi eq, %0, %328 : vector<18x128xi32>
    %c0_337 = arith.constant 0 : index
    %c1_338 = arith.constant 1 : index
    %c0_339 = arith.constant 0 : index
    %c0_340 = arith.constant 0 : index
    %330 = vector.load %arg3[%c0_337, %c1_338, %c0_339, %c0_340] : memref<1x8x18x128xf32, #tpu.memory_space<vmem>>, vector<1x1x18x128xf32>
    %331 = vector.shape_cast %330 : vector<1x1x18x128xf32> to vector<18x128xf32>
    %332 = arith.select %329, %331, %327 : vector<18x128xi1>, vector<18x128xf32>
    %c-1_i32_341 = arith.constant -1 : i32
    %333 = vector.broadcast %c-1_i32_341 : i32 to vector<18x128xi32>
    %334 = arith.cmpi eq, %0, %333 : vector<18x128xi32>
    %c0_342 = arith.constant 0 : index
    %c0_343 = arith.constant 0 : index
    %c0_344 = arith.constant 0 : index
    %c0_345 = arith.constant 0 : index
    %335 = vector.load %arg3[%c0_342, %c0_343, %c0_344, %c0_345] : memref<1x8x18x128xf32, #tpu.memory_space<vmem>>, vector<1x1x18x128xf32>
    %336 = vector.shape_cast %335 : vector<1x1x18x128xf32> to vector<18x128xf32>
    %337 = arith.select %334, %336, %332 : vector<18x128xi1>, vector<18x128xf32>
    %c1_i32_346 = arith.constant 1 : i32
    %338 = vector.broadcast %c1_i32_346 : i32 to vector<18x128xi32>
    %339 = arith.cmpi eq, %0, %338 : vector<18x128xi32>
    %c0_347 = arith.constant 0 : index
    %c6_348 = arith.constant 6 : index
    %c0_349 = arith.constant 0 : index
    %c0_350 = arith.constant 0 : index
    %340 = vector.load %arg3[%c0_347, %c6_348, %c0_349, %c0_350] : memref<1x8x18x128xf32, #tpu.memory_space<vmem>>, vector<1x1x18x128xf32>
    %341 = vector.shape_cast %340 : vector<1x1x18x128xf32> to vector<18x128xf32>
    %342 = arith.select %339, %341, %337 : vector<18x128xi1>, vector<18x128xf32>
    %c2_i32_351 = arith.constant 2 : i32
    %343 = vector.broadcast %c2_i32_351 : i32 to vector<18x128xi32>
    %344 = arith.cmpi eq, %0, %343 : vector<18x128xi32>
    %c0_352 = arith.constant 0 : index
    %c5_353 = arith.constant 5 : index
    %c0_354 = arith.constant 0 : index
    %c0_355 = arith.constant 0 : index
    %345 = vector.load %arg3[%c0_352, %c5_353, %c0_354, %c0_355] : memref<1x8x18x128xf32, #tpu.memory_space<vmem>>, vector<1x1x18x128xf32>
    %346 = vector.shape_cast %345 : vector<1x1x18x128xf32> to vector<18x128xf32>
    %347 = arith.select %344, %346, %342 : vector<18x128xi1>, vector<18x128xf32>
    %c3_i32_356 = arith.constant 3 : i32
    %348 = vector.broadcast %c3_i32_356 : i32 to vector<18x128xi32>
    %349 = arith.cmpi eq, %0, %348 : vector<18x128xi32>
    %c0_357 = arith.constant 0 : index
    %c4_358 = arith.constant 4 : index
    %c0_359 = arith.constant 0 : index
    %c0_360 = arith.constant 0 : index
    %350 = vector.load %arg3[%c0_357, %c4_358, %c0_359, %c0_360] : memref<1x8x18x128xf32, #tpu.memory_space<vmem>>, vector<1x1x18x128xf32>
    %351 = vector.shape_cast %350 : vector<1x1x18x128xf32> to vector<18x128xf32>
    %352 = arith.select %349, %351, %347 : vector<18x128xi1>, vector<18x128xf32>
    %c4_i32_361 = arith.constant 4 : i32
    %353 = vector.broadcast %c4_i32_361 : i32 to vector<18x128xi32>
    %354 = arith.cmpi eq, %0, %353 : vector<18x128xi32>
    %c0_362 = arith.constant 0 : index
    %c3_363 = arith.constant 3 : index
    %c0_364 = arith.constant 0 : index
    %c0_365 = arith.constant 0 : index
    %355 = vector.load %arg3[%c0_362, %c3_363, %c0_364, %c0_365] : memref<1x8x18x128xf32, #tpu.memory_space<vmem>>, vector<1x1x18x128xf32>
    %356 = vector.shape_cast %355 : vector<1x1x18x128xf32> to vector<18x128xf32>
    %357 = arith.select %354, %356, %352 : vector<18x128xi1>, vector<18x128xf32>
    %c0_366 = arith.constant 0 : index
    %c7_367 = arith.constant 7 : index
    %c0_368 = arith.constant 0 : index
    %c0_369 = arith.constant 0 : index
    %358 = vector.load %arg4[%c0_366, %c7_367, %c0_368, %c0_369] : memref<1x8x18x128xf32, #tpu.memory_space<vmem>>, vector<1x1x18x128xf32>
    %359 = vector.shape_cast %358 : vector<1x1x18x128xf32> to vector<18x128xf32>
    %360 = vector.shape_cast %357 : vector<18x128xf32> to vector<1x1x18x128xf32>
    tpu.vector_store %arg4[%c0_366, %c7_367, %c0_368, %c0_369], %360 {strides = array<i32>} : memref<1x8x18x128xf32, #tpu.memory_space<vmem>>, vector<1x1x18x128xf32>,
    return
  }
  func.func @transform_0(%arg0: i32, %arg1: i32) -> (i32, i32) {
    %c0_i32 = arith.constant 0 : i32
    %c0_i32_0 = arith.constant 0 : i32
    return %arg0, %c0_i32 : i32, i32
  }
  func.func @transform_1(%arg0: i32, %arg1: i32) -> (i32, i32, i32, i32) {
    %c0_i32 = arith.constant 0 : i32
    %c0_i32_0 = arith.constant 0 : i32
    %c0_i32_1 = arith.constant 0 : i32
    return %arg1, %c0_i32, %arg0, %c0_i32_0 : i32, i32, i32, i32
  }
  func.func @transform_2(%arg0: i32, %arg1: i32) -> (i32, i32, i32, i32) {
    %c0_i32 = arith.constant 0 : i32
    %c0_i32_0 = arith.constant 0 : i32
    %c0_i32_1 = arith.constant 0 : i32
    return %arg1, %c0_i32, %arg0, %c0_i32_0 : i32, i32, i32, i32
  }
}

</mosaic_0001>

<llo_original>
// kernel: tpu_custom_call.1
$region0: #{tpu_custom_call.1}
  #allocation0 [shape = 'u32[]', space=smem, size = 0x4, offset = 0x4, fixed_abs, tag = 'smem constant byte address 0x4 - core index']
  #allocation1 [shape = 'u32[72,128]{1,0:T(1,128)}', space=vmem, size = 0x9000, scoped, tag = 'internal scratch']
  %s0 = inlined_call_operand.vmem [shape: s32[18,128], index: 0, kind: input, shape index: {}]
  %s1 = inlined_call_operand.vmem [shape: f32[2,8,18,128], index: 1, kind: input, shape index: {}]
  %s2 = inlined_call_operand.vmem [shape: f32[2,8,18,128], index: 2, kind: output, shape index: {}]
  %s3 = sld [smem:[#allocation0]]
  $region41: #{tpu_custom_call.1} parent=0
    _
  %s5 = ssub.s32 1, %s3
  %s6 = scalar_select 0, %s5, %s3
  loop: start=0, step=1, limit=4
  $region2: #{tpu_custom_call.1} parent=0 // loop_pre_header
    _
  $region3: #{tpu_custom_call.1} parent=0 // loop_header
    %s8 = sphi 0, %s12
    %p9 = scmp.ge.s32.totalorder %s8, 4
    %s15 = sphi 0, %s27
    %s16 = sphi 0, %s23
    %s17 = sphi 0, %s15
    %s18 = sphi 0, %s16
    %s19 = sphi 0, %s17
    %s20 = sphi 0, %s18
    %s30 = sphi 0, %s32
    %s33 = sphi 0, %s30
    %s34 = sphi 0, %s33
    %s50 = sphi 0, %s34
    %s58 = sphi 0, %s60
    %s61 = sphi 0, %s58
    %s62 = sphi 0, %s61
    %s78 = sphi 0, %s62
    %s86 = sphi 0, %s88
    %s89 = sphi 0, %s86
    %s90 = sphi 0, %s89
    %s106 = sphi 0, %s90
  $region4: #{tpu_custom_call.1} parent=0 // loop_header_branch
    %11 = sbr.rel (%p9) target = $region8
  $region5: #{tpu_custom_call.1} parent=0 // loop_body
    %s13 = ssub.s32 %s8, 1
    %s14 = ssub.s32 %s8, 2
    %s21 = sadd.s32 1, %s16
    %p22 = scmp.ge.s32.totalorder %s21, 2
    %s23 = scalar_select %p22, 0, %s21
    %s24 = sadd.s32 1, %s15
    %s25 = scalar_select %p22, %s24, %s15
    %p26 = scmp.ge.s32.totalorder %s25, 1
    %s27 = scalar_select %p26, 0, %s25
    %s28 = ssub.s32 %s15, %s27
    %p29 = scmp.eq.s32.totalorder %s28, 0
    %s31 = sadd.s32 %s30, 1
    %s32 = scalar_select %p29, %s30, %s31
    %p35 = pneg %p29
    %p36 = scmp.eq.s32.totalorder %s8, 1
    %p37 = por %p35, %p36
    %p38 = scmp.ne.s32.totalorder %s30, %s33
    %p39 = scmp.eq.s32.totalorder %s8, 0
    %p40 = por %p38, %p39
    %p41 = scmp.ne.s32.totalorder %s30, %s33
    %p42 = scmp.eq.s32.totalorder %s13, 1
    %p43 = por %p41, %p42
    %p44 = scmp.ne.s32.totalorder %s33, %s34
    %p45 = scmp.eq.s32.totalorder %s13, 0
    %p46 = por %p44, %p45
    %p47 = scmp.ne.s32.totalorder %s33, %s34
    %p48 = scmp.eq.s32.totalorder %s14, 1
    %p49 = por %p47, %p48
    %p51 = scmp.ne.s32.totalorder %s34, %s50
    %p52 = scmp.eq.s32.totalorder %s14, 0
    %p53 = por %p51, %p52
    %s54 = ssub.s32 %s16, %s23
    %s55 = ssub.s32 %s15, %s27
    %s56 = sor.u32 %s54, %s55
    %p57 = scmp.eq.s32.totalorder %s56, 0
    %s59 = sadd.s32 %s58, 1
    %s60 = scalar_select %p57, %s58, %s59
    %p63 = pneg %p57
    %p64 = scmp.eq.s32.totalorder %s8, 1
    %p65 = por %p63, %p64
    %p66 = scmp.ne.s32.totalorder %s58, %s61
    %p67 = scmp.eq.s32.totalorder %s8, 0
    %p68 = por %p66, %p67
    %p69 = scmp.ne.s32.totalorder %s58, %s61
    %p70 = scmp.eq.s32.totalorder %s13, 1
    %p71 = por %p69, %p70
    %p72 = scmp.ne.s32.totalorder %s61, %s62
    %p73 = scmp.eq.s32.totalorder %s13, 0
    %p74 = por %p72, %p73
    %p75 = scmp.ne.s32.totalorder %s61, %s62
    %p76 = scmp.eq.s32.totalorder %s14, 1
    %p77 = por %p75, %p76
    %p79 = scmp.ne.s32.totalorder %s62, %s78
    %p80 = scmp.eq.s32.totalorder %s14, 0
    %p81 = por %p79, %p80
    %s82 = ssub.s32 %s16, %s23
    %s83 = ssub.s32 %s15, %s27
    %s84 = sor.u32 %s82, %s83
    %p85 = scmp.eq.s32.totalorder %s84, 0
    %s87 = sadd.s32 %s86, 1
    %s88 = scalar_select %p85, %s86, %s87
    %p91 = pneg %p85
    %p92 = scmp.eq.s32.totalorder %s8, 1
    %p93 = por %p91, %p92
    %p94 = scmp.ne.s32.totalorder %s86, %s89
    %p95 = scmp.eq.s32.totalorder %s8, 0
    %p96 = por %p94, %p95
    %p97 = scmp.ne.s32.totalorder %s86, %s89
    %p98 = scmp.eq.s32.totalorder %s13, 1
    %p99 = por %p97, %p98
    %p100 = scmp.ne.s32.totalorder %s89, %s90
    %p101 = scmp.eq.s32.totalorder %s13, 0
    %p102 = por %p100, %p101
    %p103 = scmp.ne.s32.totalorder %s89, %s90
    %p104 = scmp.eq.s32.totalorder %s14, 1
    %p105 = por %p103, %p104
    %p107 = scmp.ne.s32.totalorder %s90, %s106
    %p108 = scmp.eq.s32.totalorder %s14, 0
    %p109 = por %p107, %p108
    %p110 = scmp.le.s32.totalorder 1, %s8
    %p111 = scmp.lt.s32.totalorder %s8, 3
    %p112 = pnand %p110, %p111
    %p113 = pneg %p112
    // Predicated region
    $region9: #{tpu_custom_call.1} parent=5 // pred_check
      _
    $region10: #{tpu_custom_call.1} parent=5 // pred_check_branch
      %115 = sbr.rel (%p112) target = $region12
    $region11: #{tpu_custom_call.1} parent=5 // pred_region
      %s116 = ssub.s32 %s8, 1
      // Predicated region
      $region13: #{tpu_custom_call.1} parent=11 // pred_check
        %p117 = pneg %p46
      $region14: #{tpu_custom_call.1} parent=11 // pred_check_branch
        %119 = sbr.rel (%p117) target = $region16
      $region15: #{tpu_custom_call.1} parent=11 // pred_region
        %s120 = smul.u32 3, %s17
        %p121 = scmp.lt.s32.totalorder %s120, 2
        %s122 = scalar_select %p121, %s120, 2
        %s123 = smul.addr %s122, 8
        %s124 = scalar_lea.vmem %s0, %s123
        %s125 = smul.u32 3, %s17
      $region16: #{tpu_custom_call.1} parent=11 // pred_fallthru
        _
    $region12: #{tpu_custom_call.1} parent=5 // pred_fallthru
      _
    %p126 = scmp.lt.s32.totalorder %s8, 2
    // Predicated region
    $region17: #{tpu_custom_call.1} parent=5 // pred_check
      %p127 = pneg %p126
    $region18: #{tpu_custom_call.1} parent=5 // pred_check_branch
      %129 = sbr.rel (%p127) target = $region20
    $region19: #{tpu_custom_call.1} parent=5 // pred_region
      // Predicated region
      $region21: #{tpu_custom_call.1} parent=19 // pred_check
        %p130 = pneg %p68
      $region22: #{tpu_custom_call.1} parent=19 // pred_check_branch
        %132 = sbr.rel (%p130) target = $region24
      $region23: #{tpu_custom_call.1} parent=19 // pred_region
        %s133 = smul.u32 3, %s15
        %p134 = scmp.lt.s32.totalorder %s16, 1
        %s135 = scalar_select %p134, %s16, 1
        %p136 = scmp.lt.s32.totalorder %s133, 2
        %s137 = scalar_select %p136, %s133, 2
        %s138 = smul.addr %s135, 24
        %s139 = sadd.s32 %s137, %s138
        %s140 = smul.addr %s139, 8
        %s141 = scalar_lea.vmem %s1, %s140
        %s142 = smul.u32 3, %s15
      $region24: #{tpu_custom_call.1} parent=19 // pred_fallthru
        _
    $region20: #{tpu_custom_call.1} parent=5 // pred_fallthru
      _
    %p143 = scmp.le.s32.totalorder 1, %s8
    %p144 = scmp.lt.s32.totalorder %s8, 3
    %p145 = pnand %p143, %p144
    %p146 = pneg %p145
    // Predicated region
    $region25: #{tpu_custom_call.1} parent=5 // pred_check
      _
    $region26: #{tpu_custom_call.1} parent=5 // pred_check_branch
      %148 = sbr.rel (%p145) target = $region28
    $region27: #{tpu_custom_call.1} parent=5 // pred_region
      %s149 = ssub.s32 %s8, 1
      %s150 = smul.u32 3, %s17
      %p151 = scmp.lt.s32.totalorder %s150, 2
      %s152 = scalar_select %p151, %s150, 2
      %s153 = smul.addr %s152, 8
      %s154 = scalar_lea.vmem %s0, %s153
      %p155 = pneg %p46
      %p156 = pneg %p43
      %s157 = smul.u32 3, %s17
      %p158 = scmp.lt.s32.totalorder %s18, 1
      %s159 = scalar_select %p158, %s18, 1
      %p160 = scmp.lt.s32.totalorder %s157, 2
      %s161 = scalar_select %p160, %s157, 2
      %s162 = smul.addr %s159, 24
      %s163 = sadd.s32 %s161, %s162
      %s164 = smul.addr %s163, 8
      %s165 = scalar_lea.vmem %s1, %s164
      %p166 = pneg %p74
      %p167 = pneg %p71
      %p168 = pneg %p102
      %p169 = pneg %p99
      %s170 = smul.u32 3, %s17
      %p171 = scmp.lt.s32.totalorder %s18, 1
      %s172 = scalar_select %p171, %s18, 1
      %p173 = scmp.lt.s32.totalorder %s170, 2
      %s174 = scalar_select %p173, %s170, 2
      %s175 = smul.addr %s172, 24
      %s176 = sadd.s32 %s174, %s175
      %s177 = smul.addr %s176, 8
      %s178 = scalar_lea.vmem %s2, %s177
      %s179 = smul.u32 3, %s17
      %p180 = scmp.lt.s32.totalorder %s179, 2
      %s181 = scalar_select %p180, %s179, 2
      %s182 = smul.addr %s181, 8
      %s183 = scalar_lea.vmem %s0, %s182
      %s184 = smul.u32 3, %s17
      %s185 = smul.u32 3, %s17
      %p186 = scmp.lt.s32.totalorder %s18, 1
      %s187 = scalar_select %p186, %s18, 1
      %p188 = scmp.lt.s32.totalorder %s185, 2
      %s189 = scalar_select %p188, %s185, 2
      %s190 = smul.addr %s187, 24
      %s191 = sadd.s32 %s189, %s190
      %s192 = smul.addr %s191, 8
      %s193 = scalar_lea.vmem %s1, %s192
      %s194 = smul.u32 3, %s17
      %s195 = smul.u32 3, %s17
      %p196 = scmp.lt.s32.totalorder %s18, 1
      %s197 = scalar_select %p196, %s18, 1
      %p198 = scmp.lt.s32.totalorder %s195, 2
      %s199 = scalar_select %p198, %s195, 2
      %s200 = smul.addr %s197, 24
      %s201 = sadd.s32 %s199, %s200
      %s202 = smul.addr %s201, 8
      %s203 = scalar_lea.vmem %s2, %s202
      %s204 = smul.u32 3, %s17
      %v205 = vld [vmem:[%s183] sm:$0xff]
      %v206 = vld [vmem:[%s183 + $0x8] sm:$0xff]
      %v207 = vld [vmem:[%s183 + $0x10] sm:$0x3]
      %v208 = vld [vmem:[%s193] sm:$0xff]
      %v209 = vld [vmem:[%s193 + $0x8] sm:$0xff]
      %v210 = vld [vmem:[%s193 + $0x10] sm:$0x3]
      %vm211 = vcmp.eq.s32.totalorder %v205, 4294967292
      %vm212 = vcmp.eq.s32.totalorder %v206, 4294967292
      %vm213 = vcmp.eq.s32.totalorder %v207, 4294967292
      %s214 = scalar_lea.vmem %s193, 96
      %v215 = vld [vmem:[%s214] sm:$0xff]
      %v216 = vld [vmem:[%s214 + $0x8] sm:$0xff]
      %v217 = vld [vmem:[%s214 + $0x10] sm:$0x3]
      %v218 = vsel %vm211, %v215, %v208
      %v219 = vsel %vm212, %v216, %v209
      %v220 = vsel %vm213, %v217, %v210
      %vm221 = vcmp.eq.s32.totalorder %v205, 4294967293
      %vm222 = vcmp.eq.s32.totalorder %v206, 4294967293
      %vm223 = vcmp.eq.s32.totalorder %v207, 4294967293
      %s224 = scalar_lea.vmem %s193, 72
      %v225 = vld [vmem:[%s224] sm:$0xff]
      %v226 = vld [vmem:[%s224 + $0x8] sm:$0xff]
      %v227 = vld [vmem:[%s224 + $0x10] sm:$0x3]
      %v228 = vsel %vm221, %v225, %v218
      %v229 = vsel %vm222, %v226, %v219
      %v230 = vsel %vm223, %v227, %v220
      %vm231 = vcmp.eq.s32.totalorder %v205, 4294967294
      %vm232 = vcmp.eq.s32.totalorder %v206, 4294967294
      %vm233 = vcmp.eq.s32.totalorder %v207, 4294967294
      %s234 = scalar_lea.vmem %s193, 48
      %v235 = vld [vmem:[%s234] sm:$0xff]
      %v236 = vld [vmem:[%s234 + $0x8] sm:$0xff]
      %v237 = vld [vmem:[%s234 + $0x10] sm:$0x3]
      %v238 = vsel %vm231, %v235, %v228
      %v239 = vsel %vm232, %v236, %v229
      %v240 = vsel %vm233, %v237, %v230
      %vm241 = vcmp.eq.s32.totalorder %v205, 4294967295
      %vm242 = vcmp.eq.s32.totalorder %v206, 4294967295
      %vm243 = vcmp.eq.s32.totalorder %v207, 4294967295
      %s244 = scalar_lea.vmem %s193, 24
      %v245 = vld [vmem:[%s244] sm:$0xff]
      %v246 = vld [vmem:[%s244 + $0x8] sm:$0xff]
      %v247 = vld [vmem:[%s244 + $0x10] sm:$0x3]
      %v248 = vsel %vm241, %v245, %v238
      %v249 = vsel %vm242, %v246, %v239
      %v250 = vsel %vm243, %v247, %v240
      %vm251 = vcmp.eq.s32.totalorder %v205, 1
      %vm252 = vcmp.eq.s32.totalorder %v206, 1
      %vm253 = vcmp.eq.s32.totalorder %v207, 1
      %s254 = scalar_lea.vmem %s193, 168
      %v255 = vld [vmem:[%s254] sm:$0xff]
      %v256 = vld [vmem:[%s254 + $0x8] sm:$0xff]
      %v257 = vld [vmem:[%s254 + $0x10] sm:$0x3]
      %v258 = vsel %vm251, %v255, %v248
      %v259 = vsel %vm252, %v256, %v249
      %v260 = vsel %vm253, %v257, %v250
      %vm261 = vcmp.eq.s32.totalorder %v205, 2
      %vm262 = vcmp.eq.s32.totalorder %v206, 2
      %vm263 = vcmp.eq.s32.totalorder %v207, 2
      %s264 = scalar_lea.vmem %s193, 144
      %v265 = vld [vmem:[%s264] sm:$0xff]
      %v266 = vld [vmem:[%s264 + $0x8] sm:$0xff]
      %v267 = vld [vmem:[%s264 + $0x10] sm:$0x3]
      %v268 = vsel %vm261, %v265, %v258
      %v269 = vsel %vm262, %v266, %v259
      %v270 = vsel %vm263, %v267, %v260
      %vm271 = vcmp.eq.s32.totalorder %v205, 3
      %vm272 = vcmp.eq.s32.totalorder %v206, 3
      %vm273 = vcmp.eq.s32.totalorder %v207, 3
      %s274 = scalar_lea.vmem %s193, 120
      %v275 = vld [vmem:[%s274] sm:$0xff]
      %v276 = vld [vmem:[%s274 + $0x8] sm:$0xff]
      %v277 = vld [vmem:[%s274 + $0x10] sm:$0x3]
      %v278 = vsel %vm271, %v275, %v268
      %v279 = vsel %vm272, %v276, %v269
      %v280 = vsel %vm273, %v277, %v270
      %vm281 = vcmp.eq.s32.totalorder %v205, 4
      %vm282 = vcmp.eq.s32.totalorder %v206, 4
      %vm283 = vcmp.eq.s32.totalorder %v207, 4
      %v284 = vsel %vm281, %v215, %v278
      %v285 = vsel %vm282, %v216, %v279
      %v286 = vsel %vm283, %v217, %v280
      %287 = vst [vmem:[%s203] sm:$0xff] %v284
      %288 = vst [vmem:[%s203 + $0x8] sm:$0xff] %v285
      %289 = vst [vmem:[%s203 + $0x10] sm:$0x3] %v286
      %v290 = vld [vmem:[%s244] sm:$0xff]
      %v291 = vld [vmem:[%s244 + $0x8] sm:$0xff]
      %v292 = vld [vmem:[%s244 + $0x10] sm:$0x3]
      %v293 = vld [vmem:[%s274] sm:$0xff]
      %v294 = vld [vmem:[%s274 + $0x8] sm:$0xff]
      %v295 = vld [vmem:[%s274 + $0x10] sm:$0x3]
      %v296 = vsel %vm211, %v293, %v290
      %v297 = vsel %vm212, %v294, %v291
      %v298 = vsel %vm213, %v295, %v292
      %v299 = vld [vmem:[%s214] sm:$0xff]
      %v300 = vld [vmem:[%s214 + $0x8] sm:$0xff]
      %v301 = vld [vmem:[%s214 + $0x10] sm:$0x3]
      %v302 = vsel %vm221, %v299, %v296
      %v303 = vsel %vm222, %v300, %v297
      %v304 = vsel %vm223, %v301, %v298
      %v305 = vld [vmem:[%s224] sm:$0xff]
      %v306 = vld [vmem:[%s224 + $0x8] sm:$0xff]
      %v307 = vld [vmem:[%s224 + $0x10] sm:$0x3]
      %v308 = vsel %vm231, %v305, %v302
      %v309 = vsel %vm232, %v306, %v303
      %v310 = vsel %vm233, %v307, %v304
      %v311 = vld [vmem:[%s234] sm:$0xff]
      %v312 = vld [vmem:[%s234 + $0x8] sm:$0xff]
      %v313 = vld [vmem:[%s234 + $0x10] sm:$0x3]
      %v314 = vsel %vm241, %v311, %v308
      %v315 = vsel %vm242, %v312, %v309
      %v316 = vsel %vm243, %v313, %v310
      %v317 = vld [vmem:[%s193] sm:$0xff]
      %v318 = vld [vmem:[%s193 + $0x8] sm:$0xff]
      %v319 = vld [vmem:[%s193 + $0x10] sm:$0x3]
      %v320 = vsel %vm251, %v317, %v314
      %v321 = vsel %vm252, %v318, %v315
      %v322 = vsel %vm253, %v319, %v316
      %v323 = vld [vmem:[%s254] sm:$0xff]
      %v324 = vld [vmem:[%s254 + $0x8] sm:$0xff]
      %v325 = vld [vmem:[%s254 + $0x10] sm:$0x3]
      %v326 = vsel %vm261, %v323, %v320
      %v327 = vsel %vm262, %v324, %v321
      %v328 = vsel %vm263, %v325, %v322
      %v329 = vld [vmem:[%s264] sm:$0xff]
      %v330 = vld [vmem:[%s264 + $0x8] sm:$0xff]
      %v331 = vld [vmem:[%s264 + $0x10] sm:$0x3]
      %v332 = vsel %vm271, %v329, %v326
      %v333 = vsel %vm272, %v330, %v327
      %v334 = vsel %vm273, %v331, %v328
      %v335 = vsel %vm281, %v293, %v332
      %v336 = vsel %vm282, %v294, %v333
      %v337 = vsel %vm283, %v295, %v334
      %s338 = scalar_lea.vmem %s203, 24
      %339 = vst [vmem:[%s338] sm:$0xff] %v335
      %340 = vst [vmem:[%s338 + $0x8] sm:$0xff] %v336
      %341 = vst [vmem:[%s338 + $0x10] sm:$0x3] %v337
      %v342 = vld [vmem:[%s234] sm:$0xff]
      %v343 = vld [vmem:[%s234 + $0x8] sm:$0xff]
      %v344 = vld [vmem:[%s234 + $0x10] sm:$0x3]
      %v345 = vld [vmem:[%s264] sm:$0xff]
      %v346 = vld [vmem:[%s264 + $0x8] sm:$0xff]
      %v347 = vld [vmem:[%s264 + $0x10] sm:$0x3]
      %v348 = vsel %vm211, %v345, %v342
      %v349 = vsel %vm212, %v346, %v343
      %v350 = vsel %vm213, %v347, %v344
      %v351 = vld [vmem:[%s274] sm:$0xff]
      %v352 = vld [vmem:[%s274 + $0x8] sm:$0xff]
      %v353 = vld [vmem:[%s274 + $0x10] sm:$0x3]
      %v354 = vsel %vm221, %v351, %v348
      %v355 = vsel %vm222, %v352, %v349
      %v356 = vsel %vm223, %v353, %v350
      %v357 = vld [vmem:[%s214] sm:$0xff]
      %v358 = vld [vmem:[%s214 + $0x8] sm:$0xff]
      %v359 = vld [vmem:[%s214 + $0x10] sm:$0x3]
      %v360 = vsel %vm231, %v357, %v354
      %v361 = vsel %vm232, %v358, %v355
      %v362 = vsel %vm233, %v359, %v356
      %v363 = vld [vmem:[%s224] sm:$0xff]
      %v364 = vld [vmem:[%s224 + $0x8] sm:$0xff]
      %v365 = vld [vmem:[%s224 + $0x10] sm:$0x3]
      %v366 = vsel %vm241, %v363, %v360
      %v367 = vsel %vm242, %v364, %v361
      %v368 = vsel %vm243, %v365, %v362
      %v369 = vld [vmem:[%s244] sm:$0xff]
      %v370 = vld [vmem:[%s244 + $0x8] sm:$0xff]
      %v371 = vld [vmem:[%s244 + $0x10] sm:$0x3]
      %v372 = vsel %vm251, %v369, %v366
      %v373 = vsel %vm252, %v370, %v367
      %v374 = vsel %vm253, %v371, %v368
      %v375 = vld [vmem:[%s193] sm:$0xff]
      %v376 = vld [vmem:[%s193 + $0x8] sm:$0xff]
      %v377 = vld [vmem:[%s193 + $0x10] sm:$0x3]
      %v378 = vsel %vm261, %v375, %v372
      %v379 = vsel %vm262, %v376, %v373
      %v380 = vsel %vm263, %v377, %v374
      %v381 = vld [vmem:[%s254] sm:$0xff]
      %v382 = vld [vmem:[%s254 + $0x8] sm:$0xff]
      %v383 = vld [vmem:[%s254 + $0x10] sm:$0x3]
      %v384 = vsel %vm271, %v381, %v378
      %v385 = vsel %vm272, %v382, %v379
      %v386 = vsel %vm273, %v383, %v380
      %v387 = vsel %vm281, %v345, %v384
      %v388 = vsel %vm282, %v346, %v385
      %v389 = vsel %vm283, %v347, %v386
      %s390 = scalar_lea.vmem %s203, 48
      %391 = vst [vmem:[%s390] sm:$0xff] %v387
      %392 = vst [vmem:[%s390 + $0x8] sm:$0xff] %v388
      %393 = vst [vmem:[%s390 + $0x10] sm:$0x3] %v389
      %v394 = vld [vmem:[%s224] sm:$0xff]
      %v395 = vld [vmem:[%s224 + $0x8] sm:$0xff]
      %v396 = vld [vmem:[%s224 + $0x10] sm:$0x3]
      %v397 = vld [vmem:[%s254] sm:$0xff]
      %v398 = vld [vmem:[%s254 + $0x8] sm:$0xff]
      %v399 = vld [vmem:[%s254 + $0x10] sm:$0x3]
      %v400 = vsel %vm211, %v397, %v394
      %v401 = vsel %vm212, %v398, %v395
      %v402 = vsel %vm213, %v399, %v396
      %v403 = vld [vmem:[%s264] sm:$0xff]
      %v404 = vld [vmem:[%s264 + $0x8] sm:$0xff]
      %v405 = vld [vmem:[%s264 + $0x10] sm:$0x3]
      %v406 = vsel %vm221, %v403, %v400
      %v407 = vsel %vm222, %v404, %v401
      %v408 = vsel %vm223, %v405, %v402
      %v409 = vld [vmem:[%s274] sm:$0xff]
      %v410 = vld [vmem:[%s274 + $0x8] sm:$0xff]
      %v411 = vld [vmem:[%s274 + $0x10] sm:$0x3]
      %v412 = vsel %vm231, %v409, %v406
      %v413 = vsel %vm232, %v410, %v407
      %v414 = vsel %vm233, %v411, %v408
      %v415 = vld [vmem:[%s214] sm:$0xff]
      %v416 = vld [vmem:[%s214 + $0x8] sm:$0xff]
      %v417 = vld [vmem:[%s214 + $0x10] sm:$0x3]
      %v418 = vsel %vm241, %v415, %v412
      %v419 = vsel %vm242, %v416, %v413
      %v420 = vsel %vm243, %v417, %v414
      %v421 = vld [vmem:[%s234] sm:$0xff]
      %v422 = vld [vmem:[%s234 + $0x8] sm:$0xff]
      %v423 = vld [vmem:[%s234 + $0x10] sm:$0x3]
      %v424 = vsel %vm251, %v421, %v418
      %v425 = vsel %vm252, %v422, %v419
      %v426 = vsel %vm253, %v423, %v420
      %v427 = vld [vmem:[%s244] sm:$0xff]
      %v428 = vld [vmem:[%s244 + $0x8] sm:$0xff]
      %v429 = vld [vmem:[%s244 + $0x10] sm:$0x3]
      %v430 = vsel %vm261, %v427, %v424
      %v431 = vsel %vm262, %v428, %v425
      %v432 = vsel %vm263, %v429, %v426
      %v433 = vld [vmem:[%s193] sm:$0xff]
      %v434 = vld [vmem:[%s193 + $0x8] sm:$0xff]
      %v435 = vld [vmem:[%s193 + $0x10] sm:$0x3]
      %v436 = vsel %vm271, %v433, %v430
      %v437 = vsel %vm272, %v434, %v431
      %v438 = vsel %vm273, %v435, %v432
      %v439 = vsel %vm281, %v397, %v436
      %v440 = vsel %vm282, %v398, %v437
      %v441 = vsel %vm283, %v399, %v438
      %s442 = scalar_lea.vmem %s203, 72
      %443 = vst [vmem:[%s442] sm:$0xff] %v439
      %444 = vst [vmem:[%s442 + $0x8] sm:$0xff] %v440
      %445 = vst [vmem:[%s442 + $0x10] sm:$0x3] %v441
      %v446 = vld [vmem:[%s214] sm:$0xff]
      %v447 = vld [vmem:[%s214 + $0x8] sm:$0xff]
      %v448 = vld [vmem:[%s214 + $0x10] sm:$0x3]
      %v449 = vld [vmem:[%s193] sm:$0xff]
      %v450 = vld [vmem:[%s193 + $0x8] sm:$0xff]
      %v451 = vld [vmem:[%s193 + $0x10] sm:$0x3]
      %v452 = vsel %vm211, %v449, %v446
      %v453 = vsel %vm212, %v450, %v447
      %v454 = vsel %vm213, %v451, %v448
      %v455 = vld [vmem:[%s254] sm:$0xff]
      %v456 = vld [vmem:[%s254 + $0x8] sm:$0xff]
      %v457 = vld [vmem:[%s254 + $0x10] sm:$0x3]
      %v458 = vsel %vm221, %v455, %v452
      %v459 = vsel %vm222, %v456, %v453
      %v460 = vsel %vm223, %v457, %v454
      %v461 = vld [vmem:[%s264] sm:$0xff]
      %v462 = vld [vmem:[%s264 + $0x8] sm:$0xff]
      %v463 = vld [vmem:[%s264 + $0x10] sm:$0x3]
      %v464 = vsel %vm231, %v461, %v458
      %v465 = vsel %vm232, %v462, %v459
      %v466 = vsel %vm233, %v463, %v460
      %v467 = vld [vmem:[%s274] sm:$0xff]
      %v468 = vld [vmem:[%s274 + $0x8] sm:$0xff]
      %v469 = vld [vmem:[%s274 + $0x10] sm:$0x3]
      %v470 = vsel %vm241, %v467, %v464
      %v471 = vsel %vm242, %v468, %v465
      %v472 = vsel %vm243, %v469, %v466
      %v473 = vld [vmem:[%s224] sm:$0xff]
      %v474 = vld [vmem:[%s224 + $0x8] sm:$0xff]
      %v475 = vld [vmem:[%s224 + $0x10] sm:$0x3]
      %v476 = vsel %vm251, %v473, %v470
      %v477 = vsel %vm252, %v474, %v471
      %v478 = vsel %vm253, %v475, %v472
      %v479 = vld [vmem:[%s234] sm:$0xff]
      %v480 = vld [vmem:[%s234 + $0x8] sm:$0xff]
      %v481 = vld [vmem:[%s234 + $0x10] sm:$0x3]
      %v482 = vsel %vm261, %v479, %v476
      %v483 = vsel %vm262, %v480, %v477
      %v484 = vsel %vm263, %v481, %v478
      %v485 = vld [vmem:[%s244] sm:$0xff]
      %v486 = vld [vmem:[%s244 + $0x8] sm:$0xff]
      %v487 = vld [vmem:[%s244 + $0x10] sm:$0x3]
      %v488 = vsel %vm271, %v485, %v482
      %v489 = vsel %vm272, %v486, %v483
      %v490 = vsel %vm273, %v487, %v484
      %v491 = vsel %vm281, %v449, %v488
      %v492 = vsel %vm282, %v450, %v489
      %v493 = vsel %vm283, %v451, %v490
      %s494 = scalar_lea.vmem %s203, 96
      %495 = vst [vmem:[%s494] sm:$0xff] %v491
      %496 = vst [vmem:[%s494 + $0x8] sm:$0xff] %v492
      %497 = vst [vmem:[%s494 + $0x10] sm:$0x3] %v493
      %v498 = vld [vmem:[%s274] sm:$0xff]
      %v499 = vld [vmem:[%s274 + $0x8] sm:$0xff]
      %v500 = vld [vmem:[%s274 + $0x10] sm:$0x3]
      %v501 = vld [vmem:[%s244] sm:$0xff]
      %v502 = vld [vmem:[%s244 + $0x8] sm:$0xff]
      %v503 = vld [vmem:[%s244 + $0x10] sm:$0x3]
      %v504 = vsel %vm211, %v501, %v498
      %v505 = vsel %vm212, %v502, %v499
      %v506 = vsel %vm213, %v503, %v500
      %v507 = vld [vmem:[%s193] sm:$0xff]
      %v508 = vld [vmem:[%s193 + $0x8] sm:$0xff]
      %v509 = vld [vmem:[%s193 + $0x10] sm:$0x3]
      %v510 = vsel %vm221, %v507, %v504
      %v511 = vsel %vm222, %v508, %v505
      %v512 = vsel %vm223, %v509, %v506
      %v513 = vld [vmem:[%s254] sm:$0xff]
      %v514 = vld [vmem:[%s254 + $0x8] sm:$0xff]
      %v515 = vld [vmem:[%s254 + $0x10] sm:$0x3]
      %v516 = vsel %vm231, %v513, %v510
      %v517 = vsel %vm232, %v514, %v511
      %v518 = vsel %vm233, %v515, %v512
      %v519 = vld [vmem:[%s264] sm:$0xff]
      %v520 = vld [vmem:[%s264 + $0x8] sm:$0xff]
      %v521 = vld [vmem:[%s264 + $0x10] sm:$0x3]
      %v522 = vsel %vm241, %v519, %v516
      %v523 = vsel %vm242, %v520, %v517
      %v524 = vsel %vm243, %v521, %v518
      %v525 = vld [vmem:[%s214] sm:$0xff]
      %v526 = vld [vmem:[%s214 + $0x8] sm:$0xff]
      %v527 = vld [vmem:[%s214 + $0x10] sm:$0x3]
      %v528 = vsel %vm251, %v525, %v522
      %v529 = vsel %vm252, %v526, %v523
      %v530 = vsel %vm253, %v527, %v524
      %v531 = vld [vmem:[%s224] sm:$0xff]
      %v532 = vld [vmem:[%s224 + $0x8] sm:$0xff]
      %v533 = vld [vmem:[%s224 + $0x10] sm:$0x3]
      %v534 = vsel %vm261, %v531, %v528
      %v535 = vsel %vm262, %v532, %v529
      %v536 = vsel %vm263, %v533, %v530
      %v537 = vld [vmem:[%s234] sm:$0xff]
      %v538 = vld [vmem:[%s234 + $0x8] sm:$0xff]
      %v539 = vld [vmem:[%s234 + $0x10] sm:$0x3]
      %v540 = vsel %vm271, %v537, %v534
      %v541 = vsel %vm272, %v538, %v535
      %v542 = vsel %vm273, %v539, %v536
      %v543 = vsel %vm281, %v501, %v540
      %v544 = vsel %vm282, %v502, %v541
      %v545 = vsel %vm283, %v503, %v542
      %s546 = scalar_lea.vmem %s203, 120
      %547 = vst [vmem:[%s546] sm:$0xff] %v543
      %548 = vst [vmem:[%s546 + $0x8] sm:$0xff] %v544
      %549 = vst [vmem:[%s546 + $0x10] sm:$0x3] %v545
      %v550 = vld [vmem:[%s264] sm:$0xff]
      %v551 = vld [vmem:[%s264 + $0x8] sm:$0xff]
      %v552 = vld [vmem:[%s264 + $0x10] sm:$0x3]
      %v553 = vld [vmem:[%s234] sm:$0xff]
      %v554 = vld [vmem:[%s234 + $0x8] sm:$0xff]
      %v555 = vld [vmem:[%s234 + $0x10] sm:$0x3]
      %v556 = vsel %vm211, %v553, %v550
      %v557 = vsel %vm212, %v554, %v551
      %v558 = vsel %vm213, %v555, %v552
      %v559 = vld [vmem:[%s244] sm:$0xff]
      %v560 = vld [vmem:[%s244 + $0x8] sm:$0xff]
      %v561 = vld [vmem:[%s244 + $0x10] sm:$0x3]
      %v562 = vsel %vm221, %v559, %v556
      %v563 = vsel %vm222, %v560, %v557
      %v564 = vsel %vm223, %v561, %v558
      %v565 = vld [vmem:[%s193] sm:$0xff]
      %v566 = vld [vmem:[%s193 + $0x8] sm:$0xff]
      %v567 = vld [vmem:[%s193 + $0x10] sm:$0x3]
      %v568 = vsel %vm231, %v565, %v562
      %v569 = vsel %vm232, %v566, %v563
      %v570 = vsel %vm233, %v567, %v564
      %v571 = vld [vmem:[%s254] sm:$0xff]
      %v572 = vld [vmem:[%s254 + $0x8] sm:$0xff]
      %v573 = vld [vmem:[%s254 + $0x10] sm:$0x3]
      %v574 = vsel %vm241, %v571, %v568
      %v575 = vsel %vm242, %v572, %v569
      %v576 = vsel %vm243, %v573, %v570
      %v577 = vld [vmem:[%s274] sm:$0xff]
      %v578 = vld [vmem:[%s274 + $0x8] sm:$0xff]
      %v579 = vld [vmem:[%s274 + $0x10] sm:$0x3]
      %v580 = vsel %vm251, %v577, %v574
      %v581 = vsel %vm252, %v578, %v575
      %v582 = vsel %vm253, %v579, %v576
      %v583 = vld [vmem:[%s214] sm:$0xff]
      %v584 = vld [vmem:[%s214 + $0x8] sm:$0xff]
      %v585 = vld [vmem:[%s214 + $0x10] sm:$0x3]
      %v586 = vsel %vm261, %v583, %v580
      %v587 = vsel %vm262, %v584, %v581
      %v588 = vsel %vm263, %v585, %v582
      %v589 = vld [vmem:[%s224] sm:$0xff]
      %v590 = vld [vmem:[%s224 + $0x8] sm:$0xff]
      %v591 = vld [vmem:[%s224 + $0x10] sm:$0x3]
      %v592 = vsel %vm271, %v589, %v586
      %v593 = vsel %vm272, %v590, %v587
      %v594 = vsel %vm273, %v591, %v588
      %v595 = vsel %vm281, %v553, %v592
      %v596 = vsel %vm282, %v554, %v593
      %v597 = vsel %vm283, %v555, %v594
      %s598 = scalar_lea.vmem %s203, 144
      %599 = vst [vmem:[%s598] sm:$0xff] %v595
      %600 = vst [vmem:[%s598 + $0x8] sm:$0xff] %v596
      %601 = vst [vmem:[%s598 + $0x10] sm:$0x3] %v597
      %v602 = vld [vmem:[%s254] sm:$0xff]
      %v603 = vld [vmem:[%s254 + $0x8] sm:$0xff]
      %v604 = vld [vmem:[%s254 + $0x10] sm:$0x3]
      %v605 = vld [vmem:[%s224] sm:$0xff]
      %v606 = vld [vmem:[%s224 + $0x8] sm:$0xff]
      %v607 = vld [vmem:[%s224 + $0x10] sm:$0x3]
      %v608 = vsel %vm211, %v605, %v602
      %v609 = vsel %vm212, %v606, %v603
      %v610 = vsel %vm213, %v607, %v604
      %v611 = vld [vmem:[%s234] sm:$0xff]
      %v612 = vld [vmem:[%s234 + $0x8] sm:$0xff]
      %v613 = vld [vmem:[%s234 + $0x10] sm:$0x3]
      %v614 = vsel %vm221, %v611, %v608
      %v615 = vsel %vm222, %v612, %v609
      %v616 = vsel %vm223, %v613, %v610
      %v617 = vld [vmem:[%s244] sm:$0xff]
      %v618 = vld [vmem:[%s244 + $0x8] sm:$0xff]
      %v619 = vld [vmem:[%s244 + $0x10] sm:$0x3]
      %v620 = vsel %vm231, %v617, %v614
      %v621 = vsel %vm232, %v618, %v615
      %v622 = vsel %vm233, %v619, %v616
      %v623 = vld [vmem:[%s193] sm:$0xff]
      %v624 = vld [vmem:[%s193 + $0x8] sm:$0xff]
      %v625 = vld [vmem:[%s193 + $0x10] sm:$0x3]
      %v626 = vsel %vm241, %v623, %v620
      %v627 = vsel %vm242, %v624, %v621
      %v628 = vsel %vm243, %v625, %v622
      %v629 = vld [vmem:[%s264] sm:$0xff]
      %v630 = vld [vmem:[%s264 + $0x8] sm:$0xff]
      %v631 = vld [vmem:[%s264 + $0x10] sm:$0x3]
      %v632 = vsel %vm251, %v629, %v626
      %v633 = vsel %vm252, %v630, %v627
      %v634 = vsel %vm253, %v631, %v628
      %v635 = vld [vmem:[%s274] sm:$0xff]
      %v636 = vld [vmem:[%s274 + $0x8] sm:$0xff]
      %v637 = vld [vmem:[%s274 + $0x10] sm:$0x3]
      %v638 = vsel %vm261, %v635, %v632
      %v639 = vsel %vm262, %v636, %v633
      %v640 = vsel %vm263, %v637, %v634
      %v641 = vld [vmem:[%s214] sm:$0xff]
      %v642 = vld [vmem:[%s214 + $0x8] sm:$0xff]
      %v643 = vld [vmem:[%s214 + $0x10] sm:$0x3]
      %v644 = vsel %vm271, %v641, %v638
      %v645 = vsel %vm272, %v642, %v639
      %v646 = vsel %vm273, %v643, %v640
      %v647 = vsel %vm281, %v605, %v644
      %v648 = vsel %vm282, %v606, %v645
      %v649 = vsel %vm283, %v607, %v646
      %s650 = scalar_lea.vmem %s203, 168
      %651 = vst [vmem:[%s650] sm:$0xff] %v647
      %652 = vst [vmem:[%s650 + $0x8] sm:$0xff] %v648
      %653 = vst [vmem:[%s650 + $0x10] sm:$0x3] %v649
      %s654 = smul.u32 3, %s17
      %p655 = scmp.lt.s32.totalorder %s18, 1
      %s656 = scalar_select %p655, %s18, 1
      %p657 = scmp.lt.s32.totalorder %s654, 2
      %s658 = scalar_select %p657, %s654, 2
      %s659 = smul.addr %s656, 24
      %s660 = sadd.s32 %s658, %s659
      %s661 = smul.addr %s660, 8
      %s662 = scalar_lea.vmem %s2, %s661
      // Predicated region
      $region29: #{tpu_custom_call.1} parent=27 // pred_check
        %p663 = pneg %p99
      $region30: #{tpu_custom_call.1} parent=27 // pred_check_branch
        %665 = sbr.rel (%p663) target = $region32
      $region31: #{tpu_custom_call.1} parent=27 // pred_region
        %s666 = smul.u32 3, %s17
      $region32: #{tpu_custom_call.1} parent=27 // pred_fallthru
        _
    $region28: #{tpu_custom_call.1} parent=5 // pred_fallthru
      _
    %p667 = scmp.le.s32.totalorder 2, %s8
    // Predicated region
    $region33: #{tpu_custom_call.1} parent=5 // pred_check
      %p668 = pneg %p667
    $region34: #{tpu_custom_call.1} parent=5 // pred_check_branch
      %670 = sbr.rel (%p668) target = $region36
    $region35: #{tpu_custom_call.1} parent=5 // pred_region
      %s671 = ssub.s32 %s8, 2
      // Predicated region
      $region37: #{tpu_custom_call.1} parent=35 // pred_check
        %p672 = pneg %p105
      $region38: #{tpu_custom_call.1} parent=35 // pred_check_branch
        %674 = sbr.rel (%p672) target = $region40
      $region39: #{tpu_custom_call.1} parent=35 // pred_region
        %s675 = smul.u32 3, %s19
        %p676 = scmp.lt.s32.totalorder %s20, 1
        %s677 = scalar_select %p676, %s20, 1
        %p678 = scmp.lt.s32.totalorder %s675, 2
        %s679 = scalar_select %p678, %s675, 2
        %s680 = smul.addr %s677, 24
        %s681 = sadd.s32 %s679, %s680
        %s682 = smul.addr %s681, 8
        %s683 = scalar_lea.vmem %s2, %s682
      $region40: #{tpu_custom_call.1} parent=35 // pred_fallthru
        _
    $region36: #{tpu_custom_call.1} parent=5 // pred_fallthru
      _
  $region6: #{tpu_custom_call.1} parent=0 // loop_footer
    %s12 = sadd.s32 1, %s8
  $region7: #{tpu_custom_call.1} parent=0 // loop_footer_branch
    %7 = sbr.rel target = $region3
  $region8: #{tpu_custom_call.1} parent=0 // loop_exit
    _

</llo_original>
